<compile_context>
chip_gen: v5e
topology: v5e:2x2
jax: 0.10.0
libtpu: 0.0.40
codegen_flags: <defaults>
</compile_context>

<pallas_src>
import functools

import jax
import jax.numpy as jnp
from jax.experimental import pallas as pl
from jax.experimental.pallas import tpu as pltpu


def _round_up(x, m):
    return (x + m - 1) // m * m


def _composition_kernel(parent_ref, child_ref, att_ref, wsp_ref, wsc_ref,
                        bias_ref, out_ref, *, K, Wp, L, Cout):
    # parent_ref: (C, SF)        bf16, padded parent, channel-major, flattened spatial
    # child_ref : (K, C, SF)     bf16, padded children
    # att_ref   : (1, SF)        bf16, padded attention map (broadcast over channels)
    # wsp_ref   : (3, 3*Cout, C) bf16, parent-half weights * BN scale, [dy, dx*Cout+co, c]
    # wsc_ref   : (3, 3*Cout, C) bf16, child-half weights * BN scale
    # bias_ref  : (Cout, 1)      f32, folded BN bias
    # out_ref   : (Cout, L)      f32, L padded to a multiple of 128 (junk cols trimmed)
    f32 = jnp.float32

    def shift_left(x, d):
        # out[:, p] = x[:, p + d].  The d wrapped columns only land in junk output
        # columns (p >= H*Wp) that the wrapper trims.  Equivalent to jnp.roll(x, -d, 1)
        # / pltpu.roll, spelled with slices+concat for portability.
        if d == 0:
            return x
        return jnp.concatenate([x[:, d:], x[:, :d]], axis=1)

    def conv_rows(w_ref, windows):
        # windows(dy) -> (C, lanes) bf16 slab of the source shifted down by dy rows.
        # Returns (3*Cout, lanes) f32; output rows ordered (dx, co), dx applied later.
        r = jnp.dot(w_ref[0], windows(0), preferred_element_type=f32)
        r += jnp.dot(w_ref[1], windows(1), preferred_element_type=f32)
        r += jnp.dot(w_ref[2], windows(2), preferred_element_type=f32)
        return r

    def combine_dx(r):
        # (3*Cout, lanes) -> (Cout, lanes): out[:, p] = sum_dx r[dx*Cout:(dx+1)*Cout, p+dx]
        return (r[0:Cout]
                + shift_left(r[Cout:2 * Cout], 1)
                + shift_left(r[2 * Cout:3 * Cout], 2))

    # ---- k-invariant parent half: computed once, reused by every child (bias too) ----
    r_par = conv_rows(wsp_ref, lambda dy: parent_ref[:, dy * Wp:dy * Wp + L])
    parent_pre = combine_dx(r_par) + bias_ref[...]                 # (Cout, L) f32

    # ---- all K children fused along lanes into one (per-dy) matmul -------------------
    att = att_ref[...]                                             # (1, SF) bf16
    cms = [child_ref[k] * att for k in range(K)]                   # K x (C, SF) bf16
    r_ch = conv_rows(
        wsc_ref,
        lambda dy: jnp.concatenate(
            [cm[:, dy * Wp:dy * Wp + L] for cm in cms], axis=1))   # (3*Cout, K*L) f32

    # ---- per-child epilogue: + bias (already in parent_pre), ReLU, sum over k --------
    acc = None
    for k in range(K):
        y = jnp.maximum(parent_pre + combine_dx(r_ch[:, k * L:(k + 1) * L]), 0.0)
        acc = y if acc is None else acc + y
    out_ref[...] = acc                                             # single lane-dense store


def composition_forward(parent, child_list, comp_att, conv_weight,
                        bn_gamma, bn_beta, bn_mean, bn_var, eps=1e-5):
    """parent: (N, C, H, W); child_list: list of (N, C, H, W); comp_att: (N, 1, H, W).
    conv_weight: (C, 2C, 3, 3).  Returns (N, C, H, W) float32."""
    N, C, H, W = parent.shape
    K = len(child_list)
    Cout = conv_weight.shape[0]
    Hp, Wp = H + 2, W + 2

    L = _round_up(H * Wp, 128)                 # lane-dense output length (junk cols trimmed)
    if L < H * Wp + 2:                         # keep the 2 wrapped shift columns in junk space
        L += 128
    # dy window reads go up to 2*Wp + L - 1; keep them inside the zero-padded flat slab.
    SF = _round_up(max(2 * Wp + L, Hp * Wp), 128)

    # ---- layout plumbing: channel-major, zero-padded, flattened spatial on lanes -----
    def prep(x):                               # (N, Cch, H, W) -> (N, Cch, SF) bf16
        xp = jnp.pad(x, ((0, 0), (0, 0), (1, 1), (1, 1)))          # (N, Cch, Hp, Wp)
        xf = xp.reshape(N, x.shape[1], Hp * Wp)
        xf = jnp.pad(xf, ((0, 0), (0, 0), (0, SF - Hp * Wp)))
        return xf.astype(jnp.bfloat16)

    parent_f = prep(parent)                                         # (N, C, SF)
    child_f = jnp.stack([prep(c) for c in child_list], axis=1)      # (N, K, C, SF)
    att_f = prep(comp_att)                                          # (N, 1, SF)

    # Fold BN scale into the conv weights; only the bias enters the kernel.
    s = bn_gamma / jnp.sqrt(bn_var + eps)                           # (Cout,)
    w_scaled = conv_weight * s[:, None, None, None]                 # (Cout, 2C, 3, 3)

    def stack_w(w_half):   # (Cout, C, 3, 3) -> (3, 3*Cout, C): [dy, dx*Cout + co, c]
        return jnp.transpose(w_half, (2, 3, 0, 1)).reshape(3, 3 * Cout, C).astype(jnp.bfloat16)

    wsp = stack_w(w_scaled[:, :C])                                  # parent half
    wsc = stack_w(w_scaled[:, C:])                                  # child half
    bias = (bn_beta - bn_mean * s).reshape(Cout, 1).astype(jnp.float32)

    kernel = functools.partial(_composition_kernel, K=K, Wp=Wp, L=L, Cout=Cout)

    out_t = pl.pallas_call(
        kernel,
        out_shape=jax.ShapeDtypeStruct((N, Cout, L), jnp.float32),
        grid_spec=pltpu.PrefetchScalarGridSpec(
            num_scalar_prefetch=0,
            grid=(N,),
            in_specs=[
                pl.BlockSpec((pl.Squeezed(), C, SF), lambda n: (n, 0, 0)),
                pl.BlockSpec((pl.Squeezed(), K, C, SF), lambda n: (n, 0, 0, 0)),
                pl.BlockSpec((pl.Squeezed(), 1, SF), lambda n: (n, 0, 0)),
                pl.BlockSpec((3, 3 * Cout, C), lambda n: (0, 0, 0)),
                pl.BlockSpec((3, 3 * Cout, C), lambda n: (0, 0, 0)),
                pl.BlockSpec((Cout, 1), lambda n: (0, 0)),
            ],
            out_specs=pl.BlockSpec((pl.Squeezed(), Cout, L), lambda n: (n, 0, 0)),
        ),
        compiler_params=pltpu.CompilerParams(
            dimension_semantics=("parallel",)),   # batch shards across TCs on v7x
    )(parent_f, child_f, att_f, wsp, wsc, bias)

    # (N, Cout, L) -> drop lane padding -> (N, Cout, H, Wp) -> trim junk columns.
    return out_t[:, :, :H * Wp].reshape(N, Cout, H, Wp)[:, :, :, :W]


def reference_forward(parent, child_list, comp_att, conv_weight,
                      bn_gamma, bn_beta, bn_mean, bn_var, eps=1e-5):
    out = 0.0
    s = bn_gamma / jnp.sqrt(bn_var + eps)
    b = bn_beta - bn_mean * s
    for child in child_list:
        x = jnp.concatenate([parent, child * comp_att], axis=1)
        y = jax.lax.conv_general_dilated(
            x, conv_weight, window_strides=(1, 1), padding="SAME",
            dimension_numbers=("NCHW", "OIHW", "NCHW"))
        y = y * s[None, :, None, None] + b[None, :, None, None]
        out = out + jnp.maximum(y, 0.0)
    return out


if __name__ == "__main__":
    key = jax.random.PRNGKey(0)
    N, C, H, W = 2, 8, 16, 16   # hidden_dim = 8
    K = 3                        # number of children

    ks = jax.random.split(key, 8)
    parent = jax.random.normal(ks[0], (N, C, H, W), jnp.float32)
    child_list = [jax.random.normal(ks[1 + i], (N, C, H, W), jnp.float32)
                  for i in range(K)]
    comp_att = jax.nn.sigmoid(jax.random.normal(ks[4], (N, 1, H, W), jnp.float32))

    conv_weight = 0.1 * jax.random.normal(ks[5], (C, 2 * C, 3, 3), jnp.float32)
    bn_gamma = 1.0 + 0.1 * jax.random.normal(ks[6], (C,), jnp.float32)
    bn_beta = 0.1 * jax.random.normal(ks[7], (C,), jnp.float32)
    bn_mean = jnp.zeros((C,), jnp.float32)
    bn_var = jnp.ones((C,), jnp.float32)

    out = composition_forward(parent, child_list, comp_att, conv_weight,
                              bn_gamma, bn_beta, bn_mean, bn_var)
    out = jax.block_until_ready(out)

    ref = reference_forward(parent, child_list, comp_att, conv_weight,
                            bn_gamma, bn_beta, bn_mean, bn_var)
    assert out.shape == (N, C, H, W)
    # bf16 matmul inputs (contraction depth 72) -> loosened tolerance vs the f32 reference.
    assert jnp.allclose(out, ref, atol=5e-2, rtol=5e-2), float(jnp.max(jnp.abs(out - ref)))

    print("KERNEL_OK")
</pallas_src>

<mosaic_0001>
module attributes {stable_mosaic.version = 11 : i64} {
  func.func @_composition_kernel(%arg0: i32, %arg1: memref<1x8x512xbf16, #tpu.memory_space<vmem>>, %arg2: memref<1x3x8x512xbf16, #tpu.memory_space<vmem>>, %arg3: memref<1x1x512xbf16, #tpu.memory_space<vmem>>, %arg4: memref<3x24x8xbf16, #tpu.memory_space<vmem>>, %arg5: memref<3x24x8xbf16, #tpu.memory_space<vmem>>, %arg6: memref<8x1xf32, #tpu.memory_space<vmem>>, %arg7: memref<1x8x384xf32, #tpu.memory_space<vmem>>) attributes {dimension_semantics = [#tpu.dimension_semantics<parallel>], iteration_bounds = array<i64: 2>, scalar_prefetch = 0 : i64, scratch_operands = 0 : i64, tpu.core_type = #tpu.core_type<tc>, window_params = [{transform_indices = @transform_0, window_bounds = array<i64: 1, 8, 512>}, {transform_indices = @transform_1, window_bounds = array<i64: 1, 3, 8, 512>}, {transform_indices = @transform_2, window_bounds = array<i64: 1, 1, 512>}, {pipeline_mode = #tpu.pipeline_mode<synchronous>, transform_indices = @transform_3, window_bounds = array<i64: 3, 24, 8>}, {pipeline_mode = #tpu.pipeline_mode<synchronous>, transform_indices = @transform_4, window_bounds = array<i64: 3, 24, 8>}, {pipeline_mode = #tpu.pipeline_mode<synchronous>, transform_indices = @transform_5, window_bounds = array<i64: 8, 1>}, {transform_indices = @transform_6, window_bounds = array<i64: 1, 8, 384>}]} {
    %c0 = arith.constant 0 : index
    %c0_0 = arith.constant 0 : index
    %c0_1 = arith.constant 0 : index
    %0 = vector.load %arg4[%c0, %c0_0, %c0_1] : memref<3x24x8xbf16, #tpu.memory_space<vmem>>, vector<1x24x8xbf16>
    %1 = vector.shape_cast %0 : vector<1x24x8xbf16> to vector<24x8xbf16>
    %c0_2 = arith.constant 0 : index
    %c0_3 = arith.constant 0 : index
    %c0_4 = arith.constant 0 : index
    %2 = vector.load %arg1[%c0_2, %c0_3, %c0_4] : memref<1x8x512xbf16, #tpu.memory_space<vmem>>, vector<1x8x384xbf16>
    %3 = vector.shape_cast %2 : vector<1x8x384xbf16> to vector<8x384xbf16>
    %cst = arith.constant dense<0.000000e+00> : vector<24x384xf32>
    %4 = tpu.matmul %1, %3, %cst {dimension_numbers = #tpu.dot_dimension_numbers<[1], [0], [0], [1], [0, 0, 1, 1], [], []>} : vector<24x8xbf16>, vector<8x384xbf16>, vector<24x384xf32> -> vector<24x384xf32>
    %c1 = arith.constant 1 : index
    %c0_5 = arith.constant 0 : index
    %c0_6 = arith.constant 0 : index
    %5 = vector.load %arg4[%c1, %c0_5, %c0_6] : memref<3x24x8xbf16, #tpu.memory_space<vmem>>, vector<1x24x8xbf16>
    %6 = vector.shape_cast %5 : vector<1x24x8xbf16> to vector<24x8xbf16>
    %c0_7 = arith.constant 0 : index
    %c0_8 = arith.constant 0 : index
    %c18 = arith.constant 18 : index
    %7 = vector.load %arg1[%c0_7, %c0_8, %c18] : memref<1x8x512xbf16, #tpu.memory_space<vmem>>, vector<1x8x384xbf16>
    %8 = vector.shape_cast %7 : vector<1x8x384xbf16> to vector<8x384xbf16>
    %cst_9 = arith.constant dense<0.000000e+00> : vector<24x384xf32>
    %9 = tpu.matmul %6, %8, %cst_9 {dimension_numbers = #tpu.dot_dimension_numbers<[1], [0], [0], [1], [0, 0, 1, 1], [], []>} : vector<24x8xbf16>, vector<8x384xbf16>, vector<24x384xf32> -> vector<24x384xf32>
    %10 = arith.addf %4, %9 : vector<24x384xf32>
    %c2 = arith.constant 2 : index
    %c0_10 = arith.constant 0 : index
    %c0_11 = arith.constant 0 : index
    %11 = vector.load %arg4[%c2, %c0_10, %c0_11] : memref<3x24x8xbf16, #tpu.memory_space<vmem>>, vector<1x24x8xbf16>
    %12 = vector.shape_cast %11 : vector<1x24x8xbf16> to vector<24x8xbf16>
    %c0_12 = arith.constant 0 : index
    %c0_13 = arith.constant 0 : index
    %c36 = arith.constant 36 : index
    %13 = vector.load %arg1[%c0_12, %c0_13, %c36] : memref<1x8x512xbf16, #tpu.memory_space<vmem>>, vector<1x8x384xbf16>
    %14 = vector.shape_cast %13 : vector<1x8x384xbf16> to vector<8x384xbf16>
    %cst_14 = arith.constant dense<0.000000e+00> : vector<24x384xf32>
    %15 = tpu.matmul %12, %14, %cst_14 {dimension_numbers = #tpu.dot_dimension_numbers<[1], [0], [0], [1], [0, 0, 1, 1], [], []>} : vector<24x8xbf16>, vector<8x384xbf16>, vector<24x384xf32> -> vector<24x384xf32>
    %16 = arith.addf %10, %15 : vector<24x384xf32>
    %17 = vector.extract_strided_slice %16 {offsets = [0, 0], sizes = [8, 384], strides = [1, 1]} : vector<24x384xf32> to vector<8x384xf32>
    %18 = vector.extract_strided_slice %16 {offsets = [8, 0], sizes = [8, 384], strides = [1, 1]} : vector<24x384xf32> to vector<8x384xf32>
    %19 = vector.extract_strided_slice %18 {offsets = [0, 1], sizes = [8, 383], strides = [1, 1]} : vector<8x384xf32> to vector<8x383xf32>
    %20 = vector.extract_strided_slice %18 {offsets = [0, 0], sizes = [8, 1], strides = [1, 1]} : vector<8x384xf32> to vector<8x1xf32>
    %21 = tpu.concatenate %19, %20 in 1 : vector<8x383xf32>, vector<8x1xf32> -> vector<8x384xf32>
    %22 = arith.addf %17, %21 : vector<8x384xf32>
    %23 = vector.extract_strided_slice %16 {offsets = [16, 0], sizes = [8, 384], strides = [1, 1]} : vector<24x384xf32> to vector<8x384xf32>
    %24 = vector.extract_strided_slice %23 {offsets = [0, 2], sizes = [8, 382], strides = [1, 1]} : vector<8x384xf32> to vector<8x382xf32>
    %25 = vector.extract_strided_slice %23 {offsets = [0, 0], sizes = [8, 2], strides = [1, 1]} : vector<8x384xf32> to vector<8x2xf32>
    %26 = tpu.concatenate %24, %25 in 1 : vector<8x382xf32>, vector<8x2xf32> -> vector<8x384xf32>
    %27 = arith.addf %22, %26 : vector<8x384xf32>
    %c0_15 = arith.constant 0 : index
    %c0_16 = arith.constant 0 : index
    %28 = vector.load %arg6[%c0_15, %c0_16] : memref<8x1xf32, #tpu.memory_space<vmem>>, vector<8x1xf32>
    %29 = vector.broadcast %28 : vector<8x1xf32> to vector<8x384xf32>
    %30 = arith.addf %27, %29 : vector<8x384xf32>
    %c0_17 = arith.constant 0 : index
    %c0_18 = arith.constant 0 : index
    %c0_19 = arith.constant 0 : index
    %31 = vector.load %arg3[%c0_17, %c0_18, %c0_19] : memref<1x1x512xbf16, #tpu.memory_space<vmem>>, vector<1x1x512xbf16>
    %32 = vector.shape_cast %31 : vector<1x1x512xbf16> to vector<1x512xbf16>
    %c0_20 = arith.constant 0 : index
    %c0_21 = arith.constant 0 : index
    %c0_22 = arith.constant 0 : index
    %c0_23 = arith.constant 0 : index
    %33 = vector.load %arg2[%c0_20, %c0_21, %c0_22, %c0_23] : memref<1x3x8x512xbf16, #tpu.memory_space<vmem>>, vector<1x1x8x512xbf16>
    %34 = vector.shape_cast %33 : vector<1x1x8x512xbf16> to vector<8x512xbf16>
    %35 = vector.broadcast %32 : vector<1x512xbf16> to vector<8x512xbf16>
    %36 = arith.mulf %34, %35 : vector<8x512xbf16>
    %c0_24 = arith.constant 0 : index
    %c1_25 = arith.constant 1 : index
    %c0_26 = arith.constant 0 : index
    %c0_27 = arith.constant 0 : index
    %37 = vector.load %arg2[%c0_24, %c1_25, %c0_26, %c0_27] : memref<1x3x8x512xbf16, #tpu.memory_space<vmem>>, vector<1x1x8x512xbf16>
    %38 = vector.shape_cast %37 : vector<1x1x8x512xbf16> to vector<8x512xbf16>
    %39 = vector.broadcast %32 : vector<1x512xbf16> to vector<8x512xbf16>
    %40 = arith.mulf %38, %39 : vector<8x512xbf16>
    %c0_28 = arith.constant 0 : index
    %c2_29 = arith.constant 2 : index
    %c0_30 = arith.constant 0 : index
    %c0_31 = arith.constant 0 : index
    %41 = vector.load %arg2[%c0_28, %c2_29, %c0_30, %c0_31] : memref<1x3x8x512xbf16, #tpu.memory_space<vmem>>, vector<1x1x8x512xbf16>
    %42 = vector.shape_cast %41 : vector<1x1x8x512xbf16> to vector<8x512xbf16>
    %43 = vector.broadcast %32 : vector<1x512xbf16> to vector<8x512xbf16>
    %44 = arith.mulf %42, %43 : vector<8x512xbf16>
    %c0_32 = arith.constant 0 : index
    %c0_33 = arith.constant 0 : index
    %c0_34 = arith.constant 0 : index
    %45 = vector.load %arg5[%c0_32, %c0_33, %c0_34] : memref<3x24x8xbf16, #tpu.memory_space<vmem>>, vector<1x24x8xbf16>
    %46 = vector.shape_cast %45 : vector<1x24x8xbf16> to vector<24x8xbf16>
    %47 = vector.extract_strided_slice %36 {offsets = [0, 0], sizes = [8, 384], strides = [1, 1]} : vector<8x512xbf16> to vector<8x384xbf16>
    %48 = vector.extract_strided_slice %40 {offsets = [0, 0], sizes = [8, 384], strides = [1, 1]} : vector<8x512xbf16> to vector<8x384xbf16>
    %49 = vector.extract_strided_slice %44 {offsets = [0, 0], sizes = [8, 384], strides = [1, 1]} : vector<8x512xbf16> to vector<8x384xbf16>
    %50 = tpu.concatenate %47, %48, %49 in 1 : vector<8x384xbf16>, vector<8x384xbf16>, vector<8x384xbf16> -> vector<8x1152xbf16>
    %cst_35 = arith.constant dense<0.000000e+00> : vector<24x1152xf32>
    %51 = tpu.matmul %46, %50, %cst_35 {dimension_numbers = #tpu.dot_dimension_numbers<[1], [0], [0], [1], [0, 0, 1, 1], [], []>} : vector<24x8xbf16>, vector<8x1152xbf16>, vector<24x1152xf32> -> vector<24x1152xf32>
    %c1_36 = arith.constant 1 : index
    %c0_37 = arith.constant 0 : index
    %c0_38 = arith.constant 0 : index
    %52 = vector.load %arg5[%c1_36, %c0_37, %c0_38] : memref<3x24x8xbf16, #tpu.memory_space<vmem>>, vector<1x24x8xbf16>
    %53 = vector.shape_cast %52 : vector<1x24x8xbf16> to vector<24x8xbf16>
    %54 = vector.extract_strided_slice %36 {offsets = [0, 18], sizes = [8, 384], strides = [1, 1]} : vector<8x512xbf16> to vector<8x384xbf16>
    %55 = vector.extract_strided_slice %40 {offsets = [0, 18], sizes = [8, 384], strides = [1, 1]} : vector<8x512xbf16> to vector<8x384xbf16>
    %56 = vector.extract_strided_slice %44 {offsets = [0, 18], sizes = [8, 384], strides = [1, 1]} : vector<8x512xbf16> to vector<8x384xbf16>
    %57 = tpu.concatenate %54, %55, %56 in 1 : vector<8x384xbf16>, vector<8x384xbf16>, vector<8x384xbf16> -> vector<8x1152xbf16>
    %cst_39 = arith.constant dense<0.000000e+00> : vector<24x1152xf32>
    %58 = tpu.matmul %53, %57, %cst_39 {dimension_numbers = #tpu.dot_dimension_numbers<[1], [0], [0], [1], [0, 0, 1, 1], [], []>} : vector<24x8xbf16>, vector<8x1152xbf16>, vector<24x1152xf32> -> vector<24x1152xf32>
    %59 = arith.addf %51, %58 : vector<24x1152xf32>
    %c2_40 = arith.constant 2 : index
    %c0_41 = arith.constant 0 : index
    %c0_42 = arith.constant 0 : index
    %60 = vector.load %arg5[%c2_40, %c0_41, %c0_42] : memref<3x24x8xbf16, #tpu.memory_space<vmem>>, vector<1x24x8xbf16>
    %61 = vector.shape_cast %60 : vector<1x24x8xbf16> to vector<24x8xbf16>
    %62 = vector.extract_strided_slice %36 {offsets = [0, 36], sizes = [8, 384], strides = [1, 1]} : vector<8x512xbf16> to vector<8x384xbf16>
    %63 = vector.extract_strided_slice %40 {offsets = [0, 36], sizes = [8, 384], strides = [1, 1]} : vector<8x512xbf16> to vector<8x384xbf16>
    %64 = vector.extract_strided_slice %44 {offsets = [0, 36], sizes = [8, 384], strides = [1, 1]} : vector<8x512xbf16> to vector<8x384xbf16>
    %65 = tpu.concatenate %62, %63, %64 in 1 : vector<8x384xbf16>, vector<8x384xbf16>, vector<8x384xbf16> -> vector<8x1152xbf16>
    %cst_43 = arith.constant dense<0.000000e+00> : vector<24x1152xf32>
    %66 = tpu.matmul %61, %65, %cst_43 {dimension_numbers = #tpu.dot_dimension_numbers<[1], [0], [0], [1], [0, 0, 1, 1], [], []>} : vector<24x8xbf16>, vector<8x1152xbf16>, vector<24x1152xf32> -> vector<24x1152xf32>
    %67 = arith.addf %59, %66 : vector<24x1152xf32>
    %68 = vector.extract_strided_slice %67 {offsets = [0, 0], sizes = [24, 384], strides = [1, 1]} : vector<24x1152xf32> to vector<24x384xf32>
    %69 = vector.extract_strided_slice %68 {offsets = [0, 0], sizes = [8, 384], strides = [1, 1]} : vector<24x384xf32> to vector<8x384xf32>
    %70 = vector.extract_strided_slice %68 {offsets = [8, 0], sizes = [8, 384], strides = [1, 1]} : vector<24x384xf32> to vector<8x384xf32>
    %71 = vector.extract_strided_slice %70 {offsets = [0, 1], sizes = [8, 383], strides = [1, 1]} : vector<8x384xf32> to vector<8x383xf32>
    %72 = vector.extract_strided_slice %70 {offsets = [0, 0], sizes = [8, 1], strides = [1, 1]} : vector<8x384xf32> to vector<8x1xf32>
    %73 = tpu.concatenate %71, %72 in 1 : vector<8x383xf32>, vector<8x1xf32> -> vector<8x384xf32>
    %74 = arith.addf %69, %73 : vector<8x384xf32>
    %75 = vector.extract_strided_slice %68 {offsets = [16, 0], sizes = [8, 384], strides = [1, 1]} : vector<24x384xf32> to vector<8x384xf32>
    %76 = vector.extract_strided_slice %75 {offsets = [0, 2], sizes = [8, 382], strides = [1, 1]} : vector<8x384xf32> to vector<8x382xf32>
    %77 = vector.extract_strided_slice %75 {offsets = [0, 0], sizes = [8, 2], strides = [1, 1]} : vector<8x384xf32> to vector<8x2xf32>
    %78 = tpu.concatenate %76, %77 in 1 : vector<8x382xf32>, vector<8x2xf32> -> vector<8x384xf32>
    %79 = arith.addf %74, %78 : vector<8x384xf32>
    %80 = arith.addf %30, %79 : vector<8x384xf32>
    %cst_44 = arith.constant 0.000000e+00 : f32
    %81 = vector.broadcast %cst_44 : f32 to vector<8x384xf32>
    %82 = arith.maximumf %80, %81 : vector<8x384xf32>
    %83 = vector.extract_strided_slice %67 {offsets = [0, 384], sizes = [24, 384], strides = [1, 1]} : vector<24x1152xf32> to vector<24x384xf32>
    %84 = vector.extract_strided_slice %83 {offsets = [0, 0], sizes = [8, 384], strides = [1, 1]} : vector<24x384xf32> to vector<8x384xf32>
    %85 = vector.extract_strided_slice %83 {offsets = [8, 0], sizes = [8, 384], strides = [1, 1]} : vector<24x384xf32> to vector<8x384xf32>
    %86 = vector.extract_strided_slice %85 {offsets = [0, 1], sizes = [8, 383], strides = [1, 1]} : vector<8x384xf32> to vector<8x383xf32>
    %87 = vector.extract_strided_slice %85 {offsets = [0, 0], sizes = [8, 1], strides = [1, 1]} : vector<8x384xf32> to vector<8x1xf32>
    %88 = tpu.concatenate %86, %87 in 1 : vector<8x383xf32>, vector<8x1xf32> -> vector<8x384xf32>
    %89 = arith.addf %84, %88 : vector<8x384xf32>
    %90 = vector.extract_strided_slice %83 {offsets = [16, 0], sizes = [8, 384], strides = [1, 1]} : vector<24x384xf32> to vector<8x384xf32>
    %91 = vector.extract_strided_slice %90 {offsets = [0, 2], sizes = [8, 382], strides = [1, 1]} : vector<8x384xf32> to vector<8x382xf32>
    %92 = vector.extract_strided_slice %90 {offsets = [0, 0], sizes = [8, 2], strides = [1, 1]} : vector<8x384xf32> to vector<8x2xf32>
    %93 = tpu.concatenate %91, %92 in 1 : vector<8x382xf32>, vector<8x2xf32> -> vector<8x384xf32>
    %94 = arith.addf %89, %93 : vector<8x384xf32>
    %95 = arith.addf %30, %94 : vector<8x384xf32>
    %cst_45 = arith.constant 0.000000e+00 : f32
    %96 = vector.broadcast %cst_45 : f32 to vector<8x384xf32>
    %97 = arith.maximumf %95, %96 : vector<8x384xf32>
    %98 = arith.addf %82, %97 : vector<8x384xf32>
    %99 = vector.extract_strided_slice %67 {offsets = [0, 768], sizes = [24, 384], strides = [1, 1]} : vector<24x1152xf32> to vector<24x384xf32>
    %100 = vector.extract_strided_slice %99 {offsets = [0, 0], sizes = [8, 384], strides = [1, 1]} : vector<24x384xf32> to vector<8x384xf32>
    %101 = vector.extract_strided_slice %99 {offsets = [8, 0], sizes = [8, 384], strides = [1, 1]} : vector<24x384xf32> to vector<8x384xf32>
    %102 = vector.extract_strided_slice %101 {offsets = [0, 1], sizes = [8, 383], strides = [1, 1]} : vector<8x384xf32> to vector<8x383xf32>
    %103 = vector.extract_strided_slice %101 {offsets = [0, 0], sizes = [8, 1], strides = [1, 1]} : vector<8x384xf32> to vector<8x1xf32>
    %104 = tpu.concatenate %102, %103 in 1 : vector<8x383xf32>, vector<8x1xf32> -> vector<8x384xf32>
    %105 = arith.addf %100, %104 : vector<8x384xf32>
    %106 = vector.extract_strided_slice %99 {offsets = [16, 0], sizes = [8, 384], strides = [1, 1]} : vector<24x384xf32> to vector<8x384xf32>
    %107 = vector.extract_strided_slice %106 {offsets = [0, 2], sizes = [8, 382], strides = [1, 1]} : vector<8x384xf32> to vector<8x382xf32>
    %108 = vector.extract_strided_slice %106 {offsets = [0, 0], sizes = [8, 2], strides = [1, 1]} : vector<8x384xf32> to vector<8x2xf32>
    %109 = tpu.concatenate %107, %108 in 1 : vector<8x382xf32>, vector<8x2xf32> -> vector<8x384xf32>
    %110 = arith.addf %105, %109 : vector<8x384xf32>
    %111 = arith.addf %30, %110 : vector<8x384xf32>
    %cst_46 = arith.constant 0.000000e+00 : f32
    %112 = vector.broadcast %cst_46 : f32 to vector<8x384xf32>
    %113 = arith.maximumf %111, %112 : vector<8x384xf32>
    %114 = arith.addf %98, %113 : vector<8x384xf32>
    %c0_47 = arith.constant 0 : index
    %c0_48 = arith.constant 0 : index
    %c0_49 = arith.constant 0 : index
    %115 = vector.load %arg7[%c0_47, %c0_48, %c0_49] : memref<1x8x384xf32, #tpu.memory_space<vmem>>, vector<1x8x384xf32>
    %116 = vector.shape_cast %115 : vector<1x8x384xf32> to vector<8x384xf32>
    %117 = vector.shape_cast %114 : vector<8x384xf32> to vector<1x8x384xf32>
    tpu.vector_store %arg7[%c0_47, %c0_48, %c0_49], %117 {strides = array<i32>} : memref<1x8x384xf32, #tpu.memory_space<vmem>>, vector<1x8x384xf32>,
    return
  }
  func.func @transform_0(%arg0: i32) -> (i32, i32, i32) {
    %c0_i32 = arith.constant 0 : i32
    %c0_i32_0 = arith.constant 0 : i32
    %c0_i32_1 = arith.constant 0 : i32
    return %arg0, %c0_i32, %c0_i32_0 : i32, i32, i32
  }
  func.func @transform_1(%arg0: i32) -> (i32, i32, i32, i32) {
    %c0_i32 = arith.constant 0 : i32
    %c0_i32_0 = arith.constant 0 : i32
    %c0_i32_1 = arith.constant 0 : i32
    %c0_i32_2 = arith.constant 0 : i32
    return %arg0, %c0_i32, %c0_i32_0, %c0_i32_1 : i32, i32, i32, i32
  }
  func.func @transform_2(%arg0: i32) -> (i32, i32, i32) {
    %c0_i32 = arith.constant 0 : i32
    %c0_i32_0 = arith.constant 0 : i32
    %c0_i32_1 = arith.constant 0 : i32
    return %arg0, %c0_i32, %c0_i32_0 : i32, i32, i32
  }
  func.func @transform_3(%arg0: i32) -> (i32, i32, i32) {
    %c0_i32 = arith.constant 0 : i32
    %c0_i32_0 = arith.constant 0 : i32
    %c0_i32_1 = arith.constant 0 : i32
    %c0_i32_2 = arith.constant 0 : i32
    return %c0_i32, %c0_i32_0, %c0_i32_1 : i32, i32, i32
  }
  func.func @transform_4(%arg0: i32) -> (i32, i32, i32) {
    %c0_i32 = arith.constant 0 : i32
    %c0_i32_0 = arith.constant 0 : i32
    %c0_i32_1 = arith.constant 0 : i32
    %c0_i32_2 = arith.constant 0 : i32
    return %c0_i32, %c0_i32_0, %c0_i32_1 : i32, i32, i32
  }
  func.func @transform_5(%arg0: i32) -> (i32, i32) {
    %c0_i32 = arith.constant 0 : i32
    %c0_i32_0 = arith.constant 0 : i32
    %c0_i32_1 = arith.constant 0 : i32
    return %c0_i32, %c0_i32_0 : i32, i32
  }
  func.func @transform_6(%arg0: i32) -> (i32, i32, i32) {
    %c0_i32 = arith.constant 0 : i32
    %c0_i32_0 = arith.constant 0 : i32
    %c0_i32_1 = arith.constant 0 : i32
    return %arg0, %c0_i32, %c0_i32_0 : i32, i32, i32
  }
}

</mosaic_0001>

<llo_original>
// kernel: tpu_custom_call.1
$region0: #{tpu_custom_call.1}
  #allocation0 [shape = 'u32[]', space=smem, size = 0x4, offset = 0x4, fixed_abs, tag = 'smem constant byte address 0x4 - core index']
  #allocation1 [shape = 'u32[72,128]{1,0:T(1,128)}', space=vmem, size = 0x9000, scoped, tag = 'internal scratch']
  %s0 = inlined_call_operand.vmem [shape: bf16[2,8,512], index: 0, kind: input, shape index: {}]
  %s1 = inlined_call_operand.hbm [shape: bf16[2,3,8,512], index: 1, kind: input, shape index: {}]
  %s2 = inlined_call_operand.vmem [shape: bf16[2,1,512], index: 2, kind: input, shape index: {}]
  %s3 = inlined_call_operand.vmem [shape: bf16[3,24,8], index: 3, kind: input, shape index: {}]
  %s4 = inlined_call_operand.vmem [shape: bf16[3,24,8], index: 4, kind: input, shape index: {}]
  %s5 = inlined_call_operand.vmem [shape: f32[8,1], index: 5, kind: input, shape index: {}]
  %s6 = inlined_call_operand.hbm [shape: f32[2,8,384], index: 6, kind: output, shape index: {}]
  %s7 = sld [smem:[#allocation0]]
  $region61: #{tpu_custom_call.1} parent=0
    _
  %s9 = ssub.s32 1, %s7
  %s10 = scalar_select 0, %s9, %s7
  $region1: #{tpu_custom_call.1} parent=0
    #allocation2 [shape = 'u8[49152]{0}', space=vmem, size = 0xc000, scoped, tag = 'input window, operand 1']
    #allocation3 [shape = 's32[2]{0}', space=sflag, size = 0x8, scoped, tag = 'scoped memory for tpu_custom_call.1']
    #allocation4 [shape = 's32[2]{0}', space=sflag, size = 0x8, scoped, tag = 'scoped memory for tpu_custom_call.1']
    #allocation5 [shape = 'u8[24576]{0}', space=vmem, size = 0x6000, scoped, tag = 'output window, operand 0']
    %11 = vsyncpa [#allocation3], 0
    %s12 = scalar_lea.sflag [#allocation3], 1
    %13 = vsyncpa %s12, 0
    %14 = vsyncpa [#allocation4], 0
    %s15 = scalar_lea.sflag [#allocation4], 1
    %16 = vsyncpa %s15, 0
    loop: start=0, step=1, limit=4
    $region2: #{tpu_custom_call.1} parent=1 // loop_pre_header
      _
    $region3: #{tpu_custom_call.1} parent=1 // loop_header
      %s18 = sphi 0, %s22
      %p19 = scmp.ge.s32.totalorder %s18, 4
      %s28 = sphi 0, %s30
      %s31 = sphi 0, %s28
      %s32 = sphi 0, %s31
      %s48 = sphi 0, %s32
      %s54 = sphi 0, %s56
      %s57 = sphi 0, %s54
      %s58 = sphi 0, %s57
      %s74 = sphi 0, %s58
      %s80 = sphi 0, %s82
      %s83 = sphi 0, %s80
      %s84 = sphi 0, %s83
      %s100 = sphi 0, %s84
      %s104 = sphi 0, %s104
      %s106 = sphi 0, %s104
      %s107 = sphi 0, %s106
      %s121 = sphi 0, %s107
      %s125 = sphi 0, %s125
      %s127 = sphi 0, %s125
      %s128 = sphi 0, %s127
      %s142 = sphi 0, %s128
      %s146 = sphi 0, %s146
      %s148 = sphi 0, %s146
      %s149 = sphi 0, %s148
      %s163 = sphi 0, %s149
      %s169 = sphi 0, %s171
      %s172 = sphi 0, %s169
      %s173 = sphi 0, %s172
      %s189 = sphi 0, %s173
    $region4: #{tpu_custom_call.1} parent=1 // loop_header_branch
      %21 = sbr.rel (%p19) target = $region8
    $region5: #{tpu_custom_call.1} parent=1 // loop_body
      %s23 = ssub.s32 %s18, 1
      %s24 = ssub.s32 %s18, 2
      %s25 = sadd.s32 %s18, 1
      %s26 = ssub.s32 %s18, %s25
      %p27 = scmp.eq.s32.totalorder %s26, 0
      %s29 = sadd.s32 %s28, 1
      %s30 = scalar_select %p27, %s28, %s29
      %p33 = pneg %p27
      %p34 = scmp.eq.s32.totalorder %s18, 1
      %p35 = por %p33, %p34
      %p36 = scmp.ne.s32.totalorder %s28, %s31
      %p37 = scmp.eq.s32.totalorder %s18, 0
      %p38 = por %p36, %p37
      %p39 = scmp.ne.s32.totalorder %s28, %s31
      %p40 = scmp.eq.s32.totalorder %s23, 1
      %p41 = por %p39, %p40
      %p42 = scmp.ne.s32.totalorder %s31, %s32
      %p43 = scmp.eq.s32.totalorder %s23, 0
      %p44 = por %p42, %p43
      %p45 = scmp.ne.s32.totalorder %s31, %s32
      %p46 = scmp.eq.s32.totalorder %s24, 1
      %p47 = por %p45, %p46
      %p49 = scmp.ne.s32.totalorder %s32, %s48
      %p50 = scmp.eq.s32.totalorder %s24, 0
      %p51 = por %p49, %p50
      %s52 = ssub.s32 %s18, %s25
      %p53 = scmp.eq.s32.totalorder %s52, 0
      %s55 = sadd.s32 %s54, 1
      %s56 = scalar_select %p53, %s54, %s55
      %p59 = pneg %p53
      %p60 = scmp.eq.s32.totalorder %s18, 1
      %p61 = por %p59, %p60
      %p62 = scmp.ne.s32.totalorder %s54, %s57
      %p63 = scmp.eq.s32.totalorder %s18, 0
      %p64 = por %p62, %p63
      %p65 = scmp.ne.s32.totalorder %s54, %s57
      %p66 = scmp.eq.s32.totalorder %s23, 1
      %p67 = por %p65, %p66
      %p68 = scmp.ne.s32.totalorder %s57, %s58
      %p69 = scmp.eq.s32.totalorder %s23, 0
      %p70 = por %p68, %p69
      %p71 = scmp.ne.s32.totalorder %s57, %s58
      %p72 = scmp.eq.s32.totalorder %s24, 1
      %p73 = por %p71, %p72
      %p75 = scmp.ne.s32.totalorder %s58, %s74
      %p76 = scmp.eq.s32.totalorder %s24, 0
      %p77 = por %p75, %p76
      %s78 = ssub.s32 %s18, %s25
      %p79 = scmp.eq.s32.totalorder %s78, 0
      %s81 = sadd.s32 %s80, 1
      %s82 = scalar_select %p79, %s80, %s81
      %p85 = pneg %p79
      %p86 = scmp.eq.s32.totalorder %s18, 1
      %p87 = por %p85, %p86
      %p88 = scmp.ne.s32.totalorder %s80, %s83
      %p89 = scmp.eq.s32.totalorder %s18, 0
      %p90 = por %p88, %p89
      %p91 = scmp.ne.s32.totalorder %s80, %s83
      %p92 = scmp.eq.s32.totalorder %s23, 1
      %p93 = por %p91, %p92
      %p94 = scmp.ne.s32.totalorder %s83, %s84
      %p95 = scmp.eq.s32.totalorder %s23, 0
      %p96 = por %p94, %p95
      %p97 = scmp.ne.s32.totalorder %s83, %s84
      %p98 = scmp.eq.s32.totalorder %s24, 1
      %p99 = por %p97, %p98
      %p101 = scmp.ne.s32.totalorder %s84, %s100
      %p102 = scmp.eq.s32.totalorder %s24, 0
      %p103 = por %p101, %p102
      %s105 = sadd.s32 %s104, 1
      %p108 = scmp.eq.s32.totalorder %s18, 1
      %p109 = scmp.ne.s32.totalorder %s104, %s106
      %p110 = scmp.eq.s32.totalorder %s18, 0
      %p111 = por %p109, %p110
      %p112 = scmp.ne.s32.totalorder %s104, %s106
      %p113 = scmp.eq.s32.totalorder %s23, 1
      %p114 = por %p112, %p113
      %p115 = scmp.ne.s32.totalorder %s106, %s107
      %p116 = scmp.eq.s32.totalorder %s23, 0
      %p117 = por %p115, %p116
      %p118 = scmp.ne.s32.totalorder %s106, %s107
      %p119 = scmp.eq.s32.totalorder %s24, 1
      %p120 = por %p118, %p119
      %p122 = scmp.ne.s32.totalorder %s107, %s121
      %p123 = scmp.eq.s32.totalorder %s24, 0
      %p124 = por %p122, %p123
      %s126 = sadd.s32 %s125, 1
      %p129 = scmp.eq.s32.totalorder %s18, 1
      %p130 = scmp.ne.s32.totalorder %s125, %s127
      %p131 = scmp.eq.s32.totalorder %s18, 0
      %p132 = por %p130, %p131
      %p133 = scmp.ne.s32.totalorder %s125, %s127
      %p134 = scmp.eq.s32.totalorder %s23, 1
      %p135 = por %p133, %p134
      %p136 = scmp.ne.s32.totalorder %s127, %s128
      %p137 = scmp.eq.s32.totalorder %s23, 0
      %p138 = por %p136, %p137
      %p139 = scmp.ne.s32.totalorder %s127, %s128
      %p140 = scmp.eq.s32.totalorder %s24, 1
      %p141 = por %p139, %p140
      %p143 = scmp.ne.s32.totalorder %s128, %s142
      %p144 = scmp.eq.s32.totalorder %s24, 0
      %p145 = por %p143, %p144
      %s147 = sadd.s32 %s146, 1
      %p150 = scmp.eq.s32.totalorder %s18, 1
      %p151 = scmp.ne.s32.totalorder %s146, %s148
      %p152 = scmp.eq.s32.totalorder %s18, 0
      %p153 = por %p151, %p152
      %p154 = scmp.ne.s32.totalorder %s146, %s148
      %p155 = scmp.eq.s32.totalorder %s23, 1
      %p156 = por %p154, %p155
      %p157 = scmp.ne.s32.totalorder %s148, %s149
      %p158 = scmp.eq.s32.totalorder %s23, 0
      %p159 = por %p157, %p158
      %p160 = scmp.ne.s32.totalorder %s148, %s149
      %p161 = scmp.eq.s32.totalorder %s24, 1
      %p162 = por %p160, %p161
      %p164 = scmp.ne.s32.totalorder %s149, %s163
      %p165 = scmp.eq.s32.totalorder %s24, 0
      %p166 = por %p164, %p165
      %s167 = ssub.s32 %s18, %s25
      %p168 = scmp.eq.s32.totalorder %s167, 0
      %s170 = sadd.s32 %s169, 1
      %s171 = scalar_select %p168, %s169, %s170
      %p174 = pneg %p168
      %p175 = scmp.eq.s32.totalorder %s18, 1
      %p176 = por %p174, %p175
      %p177 = scmp.ne.s32.totalorder %s169, %s172
      %p178 = scmp.eq.s32.totalorder %s18, 0
      %p179 = por %p177, %p178
      %p180 = scmp.ne.s32.totalorder %s169, %s172
      %p181 = scmp.eq.s32.totalorder %s23, 1
      %p182 = por %p180, %p181
      %p183 = scmp.ne.s32.totalorder %s172, %s173
      %p184 = scmp.eq.s32.totalorder %s23, 0
      %p185 = por %p183, %p184
      %p186 = scmp.ne.s32.totalorder %s172, %s173
      %p187 = scmp.eq.s32.totalorder %s24, 1
      %p188 = por %p186, %p187
      %p190 = scmp.ne.s32.totalorder %s173, %s189
      %p191 = scmp.eq.s32.totalorder %s24, 0
      %p192 = por %p190, %p191
      %p193 = scmp.le.s32.totalorder 1, %s18
      %p194 = scmp.lt.s32.totalorder %s18, 3
      %p195 = pnand %p193, %p194
      %p196 = pneg %p195
      // Predicated region
      $region9: #{tpu_custom_call.1} parent=5 // pred_check
        _
      $region10: #{tpu_custom_call.1} parent=5 // pred_check_branch
        %198 = sbr.rel (%p195) target = $region12
      $region11: #{tpu_custom_call.1} parent=5 // pred_region
        %s199 = ssub.s32 %s18, 1
        // Predicated region
        $region13: #{tpu_custom_call.1} parent=11 // pred_check
          %p200 = pneg %p117
        $region14: #{tpu_custom_call.1} parent=11 // pred_check_branch
          %202 = sbr.rel (%p200) target = $region16
        $region15: #{tpu_custom_call.1} parent=11 // pred_region
          _
        $region16: #{tpu_custom_call.1} parent=11 // pred_fallthru
          _
        // Predicated region
        $region17: #{tpu_custom_call.1} parent=11 // pred_check
          %p203 = pneg %p138
        $region18: #{tpu_custom_call.1} parent=11 // pred_check_branch
          %205 = sbr.rel (%p203) target = $region20
        $region19: #{tpu_custom_call.1} parent=11 // pred_region
          _
        $region20: #{tpu_custom_call.1} parent=11 // pred_fallthru
          _
        // Predicated region
        $region21: #{tpu_custom_call.1} parent=11 // pred_check
          %p206 = pneg %p159
        $region22: #{tpu_custom_call.1} parent=11 // pred_check_branch
          %208 = sbr.rel (%p206) target = $region24
        $region23: #{tpu_custom_call.1} parent=11 // pred_region
          _
        $region24: #{tpu_custom_call.1} parent=11 // pred_fallthru
          _
      $region12: #{tpu_custom_call.1} parent=5 // pred_fallthru
        _
      %p209 = scmp.lt.s32.totalorder %s18, 2
      // Predicated region
      $region25: #{tpu_custom_call.1} parent=5 // pred_check
        %p210 = pneg %p209
      $region26: #{tpu_custom_call.1} parent=5 // pred_check_branch
        %212 = sbr.rel (%p210) target = $region28
      $region27: #{tpu_custom_call.1} parent=5 // pred_region
        // Predicated region
        $region29: #{tpu_custom_call.1} parent=27 // pred_check
          %p213 = pneg %p38
        $region30: #{tpu_custom_call.1} parent=27 // pred_check_branch
          %215 = sbr.rel (%p213) target = $region32
        $region31: #{tpu_custom_call.1} parent=27 // pred_region
          %p216 = scmp.lt.s32.totalorder %s18, 1
          %s217 = scalar_select %p216, %s18, 1
          %s218 = smul.addr %s217, 4
          %s219 = smul.addr %s218, 4
          %s220 = scalar_lea.vmem %s0, %s219
        $region32: #{tpu_custom_call.1} parent=27 // pred_fallthru
          _
        // Predicated region
        $region33: #{tpu_custom_call.1} parent=27 // pred_check
          %p221 = pneg %p64
        $region34: #{tpu_custom_call.1} parent=27 // pred_check_branch
          %223 = sbr.rel (%p221) target = $region36
        $region35: #{tpu_custom_call.1} parent=27 // pred_region
          %s224 = sand.u32 %s54, 1
          %s225 = scalar_lea.sflag [#allocation3], %s224
          %s226 = sand.u32 %s54, 1
          %s227 = smul.addr %s226, 48
          %s228 = scalar_lea.vmem [#allocation2], %s227
          %230 = vsyncadd %s225, 0
          %s231 = smul.addr %s18, 12
          %s232 = smul.addr %s231, 4
          %s233 = scalar_lea.hbm %s1, %s232
          %s234 = sshll.u32 %s233, 4
          %s235 = int_to_ptr.hbm [resolvable:$true] %s234
          %s236 = sshll.u32 %s228, 4
          %s237 = int_to_ptr.vmem [resolvable:$true] %s236
          %242 = dma.hbm_to_vmem [thread:$0]  %s235, 768, %s237, %s225, 256, 256, 16
        $region36: #{tpu_custom_call.1} parent=27 // pred_fallthru
          _
        // Predicated region
        $region37: #{tpu_custom_call.1} parent=27 // pred_check
          %p243 = pneg %p90
        $region38: #{tpu_custom_call.1} parent=27 // pred_check_branch
          %245 = sbr.rel (%p243) target = $region40
        $region39: #{tpu_custom_call.1} parent=27 // pred_region
          %p246 = scmp.lt.s32.totalorder %s18, 1
          %s247 = scalar_select %p246, %s18, 1
          %s248 = smul.addr %s247, 4
          %s249 = scalar_lea.vmem %s2, %s248
        $region40: #{tpu_custom_call.1} parent=27 // pred_fallthru
          _
      $region28: #{tpu_custom_call.1} parent=5 // pred_fallthru
        _
      %p250 = scmp.le.s32.totalorder 1, %s18
      %p251 = scmp.lt.s32.totalorder %s18, 3
      %p252 = pnand %p250, %p251
      %p253 = pneg %p252
      // Predicated region
      $region41: #{tpu_custom_call.1} parent=5 // pred_check
        _
      $region42: #{tpu_custom_call.1} parent=5 // pred_check_branch
        %255 = sbr.rel (%p252) target = $region44
      $region43: #{tpu_custom_call.1} parent=5 // pred_region
        %s256 = ssub.s32 %s18, 1
        %s257 = sand.u32 %s57, 1
        %s258 = scalar_lea.sflag [#allocation3], %s257
        %s259 = sand.u32 %s57, 1
        %s260 = smul.addr %s259, 48
        %s261 = scalar_lea.vmem [#allocation2], %s260
        // Predicated region
        $region45: #{tpu_custom_call.1} parent=43 // pred_check
          %p262 = pneg %p70
        $region46: #{tpu_custom_call.1} parent=43 // pred_check_branch
          %264 = sbr.rel (%p262) target = $region48
        $region47: #{tpu_custom_call.1} parent=43 // pred_region
          %266 = dma.done %s258, 768
        $region48: #{tpu_custom_call.1} parent=43 // pred_fallthru
          _
        %p267 = scmp.lt.s32.totalorder %s23, 1
        %s268 = scalar_select %p267, %s23, 1
        %s269 = smul.addr %s268, 4
        %s270 = smul.addr %s269, 4
        %s271 = scalar_lea.vmem %s0, %s270
        %p272 = pneg %p44
        %p273 = pneg %p41
        %s274 = sand.u32 %s57, 1
        %s275 = scalar_lea.sflag [#allocation3], %s274
        %s276 = sand.u32 %s57, 1
        %s277 = smul.addr %s276, 48
        %s278 = scalar_lea.vmem [#allocation2], %s277
        %p279 = pneg %p70
        %p280 = pneg %p67
        %p281 = scmp.lt.s32.totalorder %s23, 1
        %s282 = scalar_select %p281, %s23, 1
        %s283 = smul.addr %s282, 4
        %s284 = scalar_lea.vmem %s2, %s283
        %p285 = pneg %p96
        %p286 = pneg %p93
        %p287 = pneg %p117
        %p288 = pneg %p114
        %p289 = pneg %p138
        %p290 = pneg %p135
        %p291 = pneg %p159
        %p292 = pneg %p156
        %p293 = pneg %p185
        %p294 = pneg %p182
        %s295 = sand.u32 %s172, 1
        %s296 = scalar_lea.sflag [#allocation4], %s295
        %s297 = sand.u32 %s172, 1
        %s298 = smul.addr %s297, 24
        %s299 = scalar_lea.vmem [#allocation5], %s298
        %p300 = scmp.lt.s32.totalorder %s23, 1
        %s301 = scalar_select %p300, %s23, 1
        %s302 = smul.addr %s301, 4
        %s303 = smul.addr %s302, 4
        %s304 = scalar_lea.vmem %s0, %s303
        %p305 = scmp.lt.s32.totalorder %s23, 1
        %s306 = scalar_select %p305, %s23, 1
        %s307 = smul.addr %s306, 4
        %s308 = scalar_lea.vmem %s2, %s307
        %v310 = vld [vmem:[%s3] sm:$0xf]
        %v311 = vld [vmem:[%s3 + $0x4] sm:$0xf]
        %v312 = vld [vmem:[%s3 + $0x8] sm:$0xf]
        %v313 = vld [vmem:[%s304] sm:$0xff]
        %v314 = vld [vmem:[%s304 + $0x8] sm:$0xf]
        %s315 = scalar_lea.vmem %s3, 12
        %v316 = vld [vmem:[%s315] sm:$0xf]
        %v317 = vld [vmem:[%s315 + $0x4] sm:$0xf]
        %v318 = vld [vmem:[%s315 + $0x8] sm:$0xf]
        %v319 = vld [vmem:[%s304] sm:$0xff]
        %v320 = vld [vmem:[%s304 + $0x8] sm:$0xff]
        %v324 = vunpack.c.l.b16 %v316
        %v325 = vunpack.c.l.b16 %v317
        %v326 = vunpack.c.l.b16 %v318
        %v327 = vpack.c.b16 %v325, %v324
        %v328 = vpack.c.b16 %v326, %v326
        %v331 = vunpack.c.l.b16 %v319
        %v332 = vunpack.c.h.b16 %v319
        %v333 = vunpack.c.l.b16 %v320
        %v334 = vunpack.c.h.b16 %v320
        %v335 = vpack.c.b16 %v331, %v331
        %v336 = vpack.c.b16 %v332, %v332
        %v337 = vpack.c.b16 %v333, %v333
        %v338 = vpack.c.b16 %v334, %v334
        %339 = vrot.lane.b32.xlu0 %v335, 110
        %v340 = vpop.permute.xlu0 %339
        %341 = vrot.lane.b32.xlu0 %v336, 110
        %v342 = vpop.permute.xlu0 %341
        %343 = vrot.lane.b32.xlu0 %v337, 110
        %v344 = vpop.permute.xlu0 %343
        %345 = vrot.lane.b32.xlu0 %v338, 110
        %v346 = vpop.permute.xlu0 %345
        %vm347 = vcmask 900096
        %v348 = vsel %vm347, %v340, %v342
        %v349 = vsel %vm347, %v342, %v344
        %v350 = vsel %vm347, %v344, %v346
        %vm351 = vcmask 64512
        %v353 = vsel %vm351, %v327, 0
        %v356 = vsel %vm351, %v328, 0
        %vm358 = vcmask 1043456
        %v360 = vsel %vm358, %v348, 0
        %v363 = vsel %vm358, %v349, 0
        %v366 = vsel %vm358, %v350, 0
        %368 = vmatpush.bf16.msra.mxu0 0
        %369 = vmatpush.bf16.msra.mxu0 0
        %370 = vmatpush.bf16.msra.mxu0 0
        %371 = vmatpush.bf16.msra.mxu0 0
        %372 = vmatpush.bf16.msra.mxu0 0
        %373 = vmatpush.bf16.msra.mxu0 0
        %374 = vmatpush.bf16.msra.mxu0 0
        %375 = vmatpush.bf16.msra.mxu0 %v360
        %376 = vmatmul.bf16.gmra.mxu0 %v353
        %v377 = vpop.f32.mrf.mxu0
        %v378 = vadd.f32 0.0, %v377
        %v379 = vpop.f32.mrf.mxu0
        %v380 = vadd.f32 0.0, %v379
        %381 = vmatmul.bf16.gmra.mxu0 %v356
        %v382 = vpop.f32.mrf.mxu0
        %v383 = vadd.f32 0.0, %v382
        %v384 = vpop.f32.mrf.mxu0
        %385 = vdwg.mxu0
        %386 = vmatpush.bf16.msra.mxu0 0
        %387 = vmatpush.bf16.msra.mxu0 0
        %388 = vmatpush.bf16.msra.mxu0 0
        %389 = vmatpush.bf16.msra.mxu0 0
        %390 = vmatpush.bf16.msra.mxu0 0
        %391 = vmatpush.bf16.msra.mxu0 0
        %392 = vmatpush.bf16.msra.mxu0 0
        %393 = vmatpush.bf16.msra.mxu0 %v363
        %394 = vmatmul.bf16.gmra.mxu0 %v353
        %v395 = vpop.f32.mrf.mxu0
        %v396 = vadd.f32 0.0, %v395
        %v397 = vpop.f32.mrf.mxu0
        %v398 = vadd.f32 0.0, %v397
        %399 = vmatmul.bf16.gmra.mxu0 %v356
        %v400 = vpop.f32.mrf.mxu0
        %v401 = vadd.f32 0.0, %v400
        %v402 = vpop.f32.mrf.mxu0
        %403 = vdwg.mxu0
        %404 = vmatpush.bf16.msra.mxu0 0
        %405 = vmatpush.bf16.msra.mxu0 0
        %406 = vmatpush.bf16.msra.mxu0 0
        %407 = vmatpush.bf16.msra.mxu0 0
        %408 = vmatpush.bf16.msra.mxu0 0
        %409 = vmatpush.bf16.msra.mxu0 0
        %410 = vmatpush.bf16.msra.mxu0 0
        %411 = vmatpush.bf16.msra.mxu0 %v366
        %412 = vmatmul.bf16.gmra.mxu0 %v353
        %v413 = vpop.f32.mrf.mxu0
        %v414 = vadd.f32 0.0, %v413
        %v415 = vpop.f32.mrf.mxu0
        %v416 = vadd.f32 0.0, %v415
        %417 = vmatmul.bf16.gmra.mxu0 %v356
        %v418 = vpop.f32.mrf.mxu0
        %v419 = vadd.f32 0.0, %v418
        %v420 = vpop.f32.mrf.mxu0
        %421 = vdwg.mxu0
        %v425 = vunpack.c.l.b16 %v310
        %v426 = vunpack.c.l.b16 %v311
        %v427 = vunpack.c.l.b16 %v312
        %v428 = vpack.c.b16 %v426, %v425
        %v429 = vpack.c.b16 %v427, %v427
        %v432 = vunpack.c.l.b16 %v313
        %v433 = vunpack.c.h.b16 %v313
        %v434 = vunpack.c.l.b16 %v314
        %v435 = vpack.c.b16 %v432, %v432
        %v436 = vpack.c.b16 %v433, %v433
        %v437 = vpack.c.b16 %v434, %v434
        %v439 = vsel %vm351, %v428, 0
        %v442 = vsel %vm351, %v429, 0
        %v445 = vsel %vm358, %v435, 0
        %v448 = vsel %vm358, %v436, 0
        %v451 = vsel %vm358, %v437, 0
        %453 = vmatpush.bf16.msra.mxu0 0
        %454 = vmatpush.bf16.msra.mxu0 0
        %455 = vmatpush.bf16.msra.mxu0 0
        %456 = vmatpush.bf16.msra.mxu0 0
        %457 = vmatpush.bf16.msra.mxu0 0
        %458 = vmatpush.bf16.msra.mxu0 0
        %459 = vmatpush.bf16.msra.mxu0 0
        %460 = vmatpush.bf16.msra.mxu0 %v445
        %461 = vmatmul.bf16.gmra.mxu0 %v439
        %v462 = vpop.f32.mrf.mxu0
        %v463 = vadd.f32 %v378, %v462
        %v464 = vpop.f32.mrf.mxu0
        %v465 = vadd.f32 %v380, %v464
        %466 = vmatmul.bf16.gmra.mxu0 %v442
        %v467 = vpop.f32.mrf.mxu0
        %v468 = vadd.f32 %v383, %v467
        %v469 = vpop.f32.mrf.mxu0
        %470 = vdwg.mxu0
        %471 = vmatpush.bf16.msra.mxu0 0
        %472 = vmatpush.bf16.msra.mxu0 0
        %473 = vmatpush.bf16.msra.mxu0 0
        %474 = vmatpush.bf16.msra.mxu0 0
        %475 = vmatpush.bf16.msra.mxu0 0
        %476 = vmatpush.bf16.msra.mxu0 0
        %477 = vmatpush.bf16.msra.mxu0 0
        %478 = vmatpush.bf16.msra.mxu0 %v448
        %479 = vmatmul.bf16.gmra.mxu0 %v439
        %v480 = vpop.f32.mrf.mxu0
        %v481 = vadd.f32 %v396, %v480
        %v482 = vpop.f32.mrf.mxu0
        %v483 = vadd.f32 %v398, %v482
        %484 = vmatmul.bf16.gmra.mxu0 %v442
        %v485 = vpop.f32.mrf.mxu0
        %v486 = vadd.f32 %v401, %v485
        %v487 = vpop.f32.mrf.mxu0
        %488 = vdwg.mxu0
        %489 = vmatpush.bf16.msra.mxu0 0
        %490 = vmatpush.bf16.msra.mxu0 0
        %491 = vmatpush.bf16.msra.mxu0 0
        %492 = vmatpush.bf16.msra.mxu0 0
        %493 = vmatpush.bf16.msra.mxu0 0
        %494 = vmatpush.bf16.msra.mxu0 0
        %495 = vmatpush.bf16.msra.mxu0 0
        %496 = vmatpush.bf16.msra.mxu0 %v451
        %497 = vmatmul.bf16.gmra.mxu0 %v439
        %v498 = vpop.f32.mrf.mxu0
        %v499 = vadd.f32 %v414, %v498
        %v500 = vpop.f32.mrf.mxu0
        %v501 = vadd.f32 %v416, %v500
        %502 = vmatmul.bf16.gmra.mxu0 %v442
        %v503 = vpop.f32.mrf.mxu0
        %v504 = vadd.f32 %v419, %v503
        %v505 = vpop.f32.mrf.mxu0
        %506 = vdwg.mxu0
        %s507 = scalar_lea.vmem %s3, 24
        %v508 = vld [vmem:[%s507] sm:$0xf]
        %v509 = vld [vmem:[%s507 + $0x4] sm:$0xf]
        %v510 = vld [vmem:[%s507 + $0x8] sm:$0xf]
        %v514 = vunpack.c.l.b16 %v508
        %v515 = vunpack.c.l.b16 %v509
        %v516 = vunpack.c.l.b16 %v510
        %v517 = vpack.c.b16 %v515, %v514
        %v518 = vpack.c.b16 %v516, %v516
        %519 = vrot.lane.b32.xlu0 %v335, 92
        %v520 = vpop.permute.xlu0 %519
        %521 = vrot.lane.b32.xlu0 %v336, 92
        %v522 = vpop.permute.xlu0 %521
        %523 = vrot.lane.b32.xlu0 %v337, 92
        %v524 = vpop.permute.xlu0 %523
        %525 = vrot.lane.b32.xlu0 %v338, 92
        %v526 = vpop.permute.xlu0 %525
        %vm527 = vcmask 752640
        %v528 = vsel %vm527, %v520, %v522
        %v529 = vsel %vm527, %v522, %v524
        %v530 = vsel %vm527, %v524, %v526
        %v532 = vsel %vm351, %v517, 0
        %v535 = vsel %vm351, %v518, 0
        %v538 = vsel %vm358, %v528, 0
        %v541 = vsel %vm358, %v529, 0
        %v544 = vsel %vm358, %v530, 0
        %546 = vmatpush.bf16.msra.mxu0 0
        %547 = vmatpush.bf16.msra.mxu0 0
        %548 = vmatpush.bf16.msra.mxu0 0
        %549 = vmatpush.bf16.msra.mxu0 0
        %550 = vmatpush.bf16.msra.mxu0 0
        %551 = vmatpush.bf16.msra.mxu0 0
        %552 = vmatpush.bf16.msra.mxu0 0
        %553 = vmatpush.bf16.msra.mxu0 %v538
        %554 = vmatmul.bf16.gmra.mxu0 %v532
        %v555 = vpop.f32.mrf.mxu0
        %v556 = vadd.f32 0.0, %v555
        %v557 = vpop.f32.mrf.mxu0
        %v558 = vadd.f32 0.0, %v557
        %559 = vmatmul.bf16.gmra.mxu0 %v535
        %v560 = vpop.f32.mrf.mxu0
        %v561 = vadd.f32 0.0, %v560
        %v562 = vpop.f32.mrf.mxu0
        %563 = vdwg.mxu0
        %564 = vmatpush.bf16.msra.mxu0 0
        %565 = vmatpush.bf16.msra.mxu0 0
        %566 = vmatpush.bf16.msra.mxu0 0
        %567 = vmatpush.bf16.msra.mxu0 0
        %568 = vmatpush.bf16.msra.mxu0 0
        %569 = vmatpush.bf16.msra.mxu0 0
        %570 = vmatpush.bf16.msra.mxu0 0
        %571 = vmatpush.bf16.msra.mxu0 %v541
        %572 = vmatmul.bf16.gmra.mxu0 %v532
        %v573 = vpop.f32.mrf.mxu0
        %v574 = vadd.f32 0.0, %v573
        %v575 = vpop.f32.mrf.mxu0
        %v576 = vadd.f32 0.0, %v575
        %577 = vmatmul.bf16.gmra.mxu0 %v535
        %v578 = vpop.f32.mrf.mxu0
        %v579 = vadd.f32 0.0, %v578
        %v580 = vpop.f32.mrf.mxu0
        %581 = vdwg.mxu0
        %582 = vmatpush.bf16.msra.mxu0 0
        %583 = vmatpush.bf16.msra.mxu0 0
        %584 = vmatpush.bf16.msra.mxu0 0
        %585 = vmatpush.bf16.msra.mxu0 0
        %586 = vmatpush.bf16.msra.mxu0 0
        %587 = vmatpush.bf16.msra.mxu0 0
        %588 = vmatpush.bf16.msra.mxu0 0
        %589 = vmatpush.bf16.msra.mxu0 %v544
        %590 = vmatmul.bf16.gmra.mxu0 %v532
        %v591 = vpop.f32.mrf.mxu0
        %v592 = vadd.f32 0.0, %v591
        %v593 = vpop.f32.mrf.mxu0
        %v594 = vadd.f32 0.0, %v593
        %595 = vmatmul.bf16.gmra.mxu0 %v535
        %v596 = vpop.f32.mrf.mxu0
        %v597 = vadd.f32 0.0, %v596
        %v598 = vpop.f32.mrf.mxu0
        %599 = vdwg.mxu0
        %v600 = vadd.f32 %v463, %v556
        %v601 = vadd.f32 %v481, %v574
        %v602 = vadd.f32 %v499, %v592
        %v603 = vadd.f32 %v465, %v558
        %v604 = vadd.f32 %v483, %v576
        %v605 = vadd.f32 %v501, %v594
        %v606 = vadd.f32 %v468, %v561
        %v607 = vadd.f32 %v486, %v579
        %v608 = vadd.f32 %v504, %v597
        %612 = vrot.lane.b32.xlu0 %v603, 127
        %v613 = vpop.permute.xlu0 %612
        %614 = vrot.lane.b32.xlu0 %v604, 127
        %v615 = vpop.permute.xlu0 %614
        %616 = vrot.lane.b32.xlu0 %v605, 127
        %v617 = vpop.permute.xlu0 %616
        %vm618 = vcmask 1039360
        %v619 = vsel %vm618, %v613, %v615
        %v620 = vsel %vm618, %v615, %v617
        %v625 = vsel %vm618, %v617, %v613
        %v626 = vadd.f32 %v600, %v619
        %v627 = vadd.f32 %v601, %v620
        %v628 = vadd.f32 %v602, %v625
        %632 = vrot.lane.b32.xlu0 %v606, 126
        %v633 = vpop.permute.xlu0 %632
        %634 = vrot.lane.b32.xlu0 %v607, 126
        %v635 = vpop.permute.xlu0 %634
        %636 = vrot.lane.b32.xlu0 %v608, 126
        %v637 = vpop.permute.xlu0 %636
        %vm638 = vcmask 1031168
        %v639 = vsel %vm638, %v633, %v635
        %v640 = vsel %vm638, %v635, %v637
        %v645 = vsel %vm638, %v637, %v633
        %v646 = vadd.f32 %v626, %v639
        %v647 = vadd.f32 %v627, %v640
        %v648 = vadd.f32 %v628, %v645
        %v649 = vld [vmem:[%s5] sm:$0xff]
        %651 = vset.pattern.permute.xlu0 0
        %652 = vperm.xlu0 %651, %v649
        %v653 = vpop.permute.xlu0 %652
        %v655 = vadd.f32 %v646, %v653
        %v656 = vadd.f32 %v647, %v653
        %v657 = vadd.f32 %v648, %v653
        %v658 = vld [vmem:[%s308] sm:$0xf]
        %v659 = vld [vmem:[%s261] sm:$0xff]
        %v660 = vld [vmem:[%s261 + $0x8] sm:$0xff]
        %662 = vst [vmem:[#allocation1] ss:$9 sm:$0xff] %v658
        %v663 = vld [vmem:[#allocation1] sm:$0xff]
        %v664 = vld [vmem:[#allocation1 + $0x9] sm:$0xff]
        %v665 = vld [vmem:[#allocation1 + $0x12] sm:$0xff]
        %v666 = vld [vmem:[#allocation1 + $0x1b] sm:$0xff]
        %v667 = vpack.i.b16 %v663, %v663
        %v669 = vperm.slane %v667, 0
        %v670 = vpack.i.b16 %v664, %v664
        %v672 = vperm.slane %v670, 0
        %v673 = vpack.i.b16 %v665, %v665
        %v675 = vperm.slane %v673, 0
        %v676 = vpack.i.b16 %v666, %v666
        %v678 = vperm.slane %v676, 0
        %v679 = vunpack.c.l.bf16 %v659
        %v680 = vunpack.c.h.bf16 %v659
        %v681 = vunpack.c.l.bf16 %v660
        %v682 = vunpack.c.h.bf16 %v660
        %v683 = vunpack.c.l.bf16 %v669
        %v684 = vunpack.c.l.bf16 %v672
        %v685 = vunpack.c.l.bf16 %v675
        %v686 = vunpack.c.l.bf16 %v678
        %v687 = vmul.f32 %v679, %v683
        %v688 = vmul.f32 %v680, %v684
        %v689 = vmul.f32 %v681, %v685
        %v690 = vmul.f32 %v682, %v686
        %v691 = vpack.c.bf16 %v688, %v687
        %v692 = vpack.c.bf16 %v690, %v689
        %s693 = scalar_lea.vmem %s261, 16 [#allocation2]
        %v694 = vld [vmem:[%s693] sm:$0xff]
        %v695 = vld [vmem:[%s693 + $0x8] sm:$0xff]
        %v696 = vunpack.c.l.bf16 %v694
        %v697 = vunpack.c.h.bf16 %v694
        %v698 = vunpack.c.l.bf16 %v695
        %v699 = vunpack.c.h.bf16 %v695
        %v700 = vmul.f32 %v696, %v683
        %v701 = vmul.f32 %v697, %v684
        %v702 = vmul.f32 %v698, %v685
        %v703 = vmul.f32 %v699, %v686
        %v704 = vpack.c.bf16 %v701, %v700
        %v705 = vpack.c.bf16 %v703, %v702
        %s706 = scalar_lea.vmem %s261, 32 [#allocation2]
        %v707 = vld [vmem:[%s706] sm:$0xff]
        %v708 = vld [vmem:[%s706 + $0x8] sm:$0xff]
        %v709 = vunpack.c.l.bf16 %v707
        %v710 = vunpack.c.h.bf16 %v707
        %v711 = vunpack.c.l.bf16 %v708
        %v712 = vunpack.c.h.bf16 %v708
        %v713 = vmul.f32 %v709, %v683
        %v714 = vmul.f32 %v710, %v684
        %v715 = vmul.f32 %v711, %v685
        %v716 = vmul.f32 %v712, %v686
        %v717 = vpack.c.bf16 %v714, %v713
        %v718 = vpack.c.bf16 %v716, %v715
        %v719 = vld [vmem:[%s4] sm:$0xf]
        %v720 = vld [vmem:[%s4 + $0x4] sm:$0xf]
        %v721 = vld [vmem:[%s4 + $0x8] sm:$0xf]
        %v724 = vunpack.c.l.b16 %v691
        %v725 = vunpack.c.h.b16 %v691
        %v726 = vunpack.c.l.b16 %v692
        %v727 = vpack.c.b16 %v724, %v724
        %v728 = vpack.c.b16 %v725, %v725
        %v729 = vpack.c.b16 %v726, %v726
        %v732 = vunpack.c.l.b16 %v704
        %v733 = vunpack.c.h.b16 %v704
        %v734 = vunpack.c.l.b16 %v705
        %v735 = vpack.c.b16 %v732, %v732
        %v736 = vpack.c.b16 %v733, %v733
        %v737 = vpack.c.b16 %v734, %v734
        %v740 = vunpack.c.l.b16 %v717
        %v741 = vunpack.c.h.b16 %v717
        %v742 = vunpack.c.l.b16 %v718
        %v743 = vpack.c.b16 %v740, %v740
        %v744 = vpack.c.b16 %v741, %v741
        %v745 = vpack.c.b16 %v742, %v742
        %s746 = scalar_lea.vmem %s4, 12
        %v747 = vld [vmem:[%s746] sm:$0xf]
        %v748 = vld [vmem:[%s746 + $0x4] sm:$0xf]
        %v749 = vld [vmem:[%s746 + $0x8] sm:$0xf]
        %v750 = vunpack.c.h.b16 %v692
        %v751 = vpack.c.b16 %v750, %v750
        %752 = vrot.lane.b32.xlu0 %v727, 110
        %v753 = vpop.permute.xlu0 %752
        %754 = vrot.lane.b32.xlu0 %v728, 110
        %v755 = vpop.permute.xlu0 %754
        %756 = vrot.lane.b32.xlu0 %v729, 110
        %v757 = vpop.permute.xlu0 %756
        %758 = vrot.lane.b32.xlu0 %v751, 110
        %v759 = vpop.permute.xlu0 %758
        %v760 = vsel %vm347, %v753, %v755
        %v761 = vsel %vm347, %v755, %v757
        %v762 = vsel %vm347, %v757, %v759
        %v763 = vunpack.c.h.b16 %v705
        %v764 = vpack.c.b16 %v763, %v763
        %765 = vrot.lane.b32.xlu0 %v735, 110
        %v766 = vpop.permute.xlu0 %765
        %767 = vrot.lane.b32.xlu0 %v736, 110
        %v768 = vpop.permute.xlu0 %767
        %769 = vrot.lane.b32.xlu0 %v737, 110
        %v770 = vpop.permute.xlu0 %769
        %771 = vrot.lane.b32.xlu0 %v764, 110
        %v772 = vpop.permute.xlu0 %771
        %v773 = vsel %vm347, %v766, %v768
        %v774 = vsel %vm347, %v768, %v770
        %v775 = vsel %vm347, %v770, %v772
        %v776 = vunpack.c.h.b16 %v718
        %v777 = vpack.c.b16 %v776, %v776
        %778 = vrot.lane.b32.xlu0 %v743, 110
        %v779 = vpop.permute.xlu0 %778
        %780 = vrot.lane.b32.xlu0 %v744, 110
        %v781 = vpop.permute.xlu0 %780
        %782 = vrot.lane.b32.xlu0 %v745, 110
        %v783 = vpop.permute.xlu0 %782
        %784 = vrot.lane.b32.xlu0 %v777, 110
        %v785 = vpop.permute.xlu0 %784
        %v786 = vsel %vm347, %v779, %v781
        %v787 = vsel %vm347, %v781, %v783
        %v788 = vsel %vm347, %v783, %v785
        %v792 = vunpack.c.l.b16 %v747
        %v793 = vunpack.c.l.b16 %v748
        %v794 = vunpack.c.l.b16 %v749
        %v795 = vpack.c.b16 %v793, %v792
        %v796 = vpack.c.b16 %v794, %v794
        %v798 = vsel %vm351, %v795, 0
        %v801 = vsel %vm351, %v796, 0
        %v804 = vsel %vm358, %v760, 0
        %v807 = vsel %vm358, %v761, 0
        %v810 = vsel %vm358, %v762, 0
        %v813 = vsel %vm358, %v773, 0
        %v816 = vsel %vm358, %v774, 0
        %v819 = vsel %vm358, %v775, 0
        %v822 = vsel %vm358, %v786, 0
        %v825 = vsel %vm358, %v787, 0
        %v828 = vsel %vm358, %v788, 0
        %830 = vmatpush.bf16.msra.mxu0 0
        %831 = vmatpush.bf16.msra.mxu0 0
        %832 = vmatpush.bf16.msra.mxu0 0
        %833 = vmatpush.bf16.msra.mxu0 0
        %834 = vmatpush.bf16.msra.mxu0 0
        %835 = vmatpush.bf16.msra.mxu0 0
        %836 = vmatpush.bf16.msra.mxu0 0
        %837 = vmatpush.bf16.msra.mxu0 %v804
        %838 = vmatmul.bf16.gmra.mxu0 %v798
        %v839 = vpop.f32.mrf.mxu0
        %v840 = vadd.f32 0.0, %v839
        %v841 = vpop.f32.mrf.mxu0
        %v842 = vadd.f32 0.0, %v841
        %843 = vmatmul.bf16.gmra.mxu0 %v801
        %v844 = vpop.f32.mrf.mxu0
        %v845 = vadd.f32 0.0, %v844
        %v846 = vpop.f32.mrf.mxu0
        %847 = vdwg.mxu0
        %848 = vmatpush.bf16.msra.mxu0 0
        %849 = vmatpush.bf16.msra.mxu0 0
        %850 = vmatpush.bf16.msra.mxu0 0
        %851 = vmatpush.bf16.msra.mxu0 0
        %852 = vmatpush.bf16.msra.mxu0 0
        %853 = vmatpush.bf16.msra.mxu0 0
        %854 = vmatpush.bf16.msra.mxu0 0
        %855 = vmatpush.bf16.msra.mxu0 %v807
        %856 = vmatmul.bf16.gmra.mxu0 %v798
        %v857 = vpop.f32.mrf.mxu0
        %v858 = vadd.f32 0.0, %v857
        %v859 = vpop.f32.mrf.mxu0
        %v860 = vadd.f32 0.0, %v859
        %861 = vmatmul.bf16.gmra.mxu0 %v801
        %v862 = vpop.f32.mrf.mxu0
        %v863 = vadd.f32 0.0, %v862
        %v864 = vpop.f32.mrf.mxu0
        %865 = vdwg.mxu0
        %866 = vmatpush.bf16.msra.mxu0 0
        %867 = vmatpush.bf16.msra.mxu0 0
        %868 = vmatpush.bf16.msra.mxu0 0
        %869 = vmatpush.bf16.msra.mxu0 0
        %870 = vmatpush.bf16.msra.mxu0 0
        %871 = vmatpush.bf16.msra.mxu0 0
        %872 = vmatpush.bf16.msra.mxu0 0
        %873 = vmatpush.bf16.msra.mxu0 %v810
        %874 = vmatmul.bf16.gmra.mxu0 %v798
        %v875 = vpop.f32.mrf.mxu0
        %v876 = vadd.f32 0.0, %v875
        %v877 = vpop.f32.mrf.mxu0
        %v878 = vadd.f32 0.0, %v877
        %879 = vmatmul.bf16.gmra.mxu0 %v801
        %v880 = vpop.f32.mrf.mxu0
        %v881 = vadd.f32 0.0, %v880
        %v882 = vpop.f32.mrf.mxu0
        %883 = vdwg.mxu0
        %884 = vmatpush.bf16.msra.mxu0 0
        %885 = vmatpush.bf16.msra.mxu0 0
        %886 = vmatpush.bf16.msra.mxu0 0
        %887 = vmatpush.bf16.msra.mxu0 0
        %888 = vmatpush.bf16.msra.mxu0 0
        %889 = vmatpush.bf16.msra.mxu0 0
        %890 = vmatpush.bf16.msra.mxu0 0
        %891 = vmatpush.bf16.msra.mxu0 %v813
        %892 = vmatmul.bf16.gmra.mxu0 %v798
        %v893 = vpop.f32.mrf.mxu0
        %v894 = vadd.f32 0.0, %v893
        %v895 = vpop.f32.mrf.mxu0
        %v896 = vadd.f32 0.0, %v895
        %897 = vmatmul.bf16.gmra.mxu0 %v801
        %v898 = vpop.f32.mrf.mxu0
        %v899 = vadd.f32 0.0, %v898
        %v900 = vpop.f32.mrf.mxu0
        %901 = vdwg.mxu0
        %902 = vmatpush.bf16.msra.mxu0 0
        %903 = vmatpush.bf16.msra.mxu0 0
        %904 = vmatpush.bf16.msra.mxu0 0
        %905 = vmatpush.bf16.msra.mxu0 0
        %906 = vmatpush.bf16.msra.mxu0 0
        %907 = vmatpush.bf16.msra.mxu0 0
        %908 = vmatpush.bf16.msra.mxu0 0
        %909 = vmatpush.bf16.msra.mxu0 %v816
        %910 = vmatmul.bf16.gmra.mxu0 %v798
        %v911 = vpop.f32.mrf.mxu0
        %v912 = vadd.f32 0.0, %v911
        %v913 = vpop.f32.mrf.mxu0
        %v914 = vadd.f32 0.0, %v913
        %915 = vmatmul.bf16.gmra.mxu0 %v801
        %v916 = vpop.f32.mrf.mxu0
        %v917 = vadd.f32 0.0, %v916
        %v918 = vpop.f32.mrf.mxu0
        %919 = vdwg.mxu0
        %920 = vmatpush.bf16.msra.mxu0 0
        %921 = vmatpush.bf16.msra.mxu0 0
        %922 = vmatpush.bf16.msra.mxu0 0
        %923 = vmatpush.bf16.msra.mxu0 0
        %924 = vmatpush.bf16.msra.mxu0 0
        %925 = vmatpush.bf16.msra.mxu0 0
        %926 = vmatpush.bf16.msra.mxu0 0
        %927 = vmatpush.bf16.msra.mxu0 %v819
        %928 = vmatmul.bf16.gmra.mxu0 %v798
        %v929 = vpop.f32.mrf.mxu0
        %v930 = vadd.f32 0.0, %v929
        %v931 = vpop.f32.mrf.mxu0
        %v932 = vadd.f32 0.0, %v931
        %933 = vmatmul.bf16.gmra.mxu0 %v801
        %v934 = vpop.f32.mrf.mxu0
        %v935 = vadd.f32 0.0, %v934
        %v936 = vpop.f32.mrf.mxu0
        %937 = vdwg.mxu0
        %938 = vmatpush.bf16.msra.mxu0 0
        %939 = vmatpush.bf16.msra.mxu0 0
        %940 = vmatpush.bf16.msra.mxu0 0
        %941 = vmatpush.bf16.msra.mxu0 0
        %942 = vmatpush.bf16.msra.mxu0 0
        %943 = vmatpush.bf16.msra.mxu0 0
        %944 = vmatpush.bf16.msra.mxu0 0
        %945 = vmatpush.bf16.msra.mxu0 %v822
        %946 = vmatmul.bf16.gmra.mxu0 %v798
        %v947 = vpop.f32.mrf.mxu0
        %v948 = vadd.f32 0.0, %v947
        %v949 = vpop.f32.mrf.mxu0
        %v950 = vadd.f32 0.0, %v949
        %951 = vmatmul.bf16.gmra.mxu0 %v801
        %v952 = vpop.f32.mrf.mxu0
        %v953 = vadd.f32 0.0, %v952
        %v954 = vpop.f32.mrf.mxu0
        %955 = vdwg.mxu0
        %956 = vmatpush.bf16.msra.mxu0 0
        %957 = vmatpush.bf16.msra.mxu0 0
        %958 = vmatpush.bf16.msra.mxu0 0
        %959 = vmatpush.bf16.msra.mxu0 0
        %960 = vmatpush.bf16.msra.mxu0 0
        %961 = vmatpush.bf16.msra.mxu0 0
        %962 = vmatpush.bf16.msra.mxu0 0
        %963 = vmatpush.bf16.msra.mxu0 %v825
        %964 = vmatmul.bf16.gmra.mxu0 %v798
        %v965 = vpop.f32.mrf.mxu0
        %v966 = vadd.f32 0.0, %v965
        %v967 = vpop.f32.mrf.mxu0
        %v968 = vadd.f32 0.0, %v967
        %969 = vmatmul.bf16.gmra.mxu0 %v801
        %v970 = vpop.f32.mrf.mxu0
        %v971 = vadd.f32 0.0, %v970
        %v972 = vpop.f32.mrf.mxu0
        %973 = vdwg.mxu0
        %974 = vmatpush.bf16.msra.mxu0 0
        %975 = vmatpush.bf16.msra.mxu0 0
        %976 = vmatpush.bf16.msra.mxu0 0
        %977 = vmatpush.bf16.msra.mxu0 0
        %978 = vmatpush.bf16.msra.mxu0 0
        %979 = vmatpush.bf16.msra.mxu0 0
        %980 = vmatpush.bf16.msra.mxu0 0
        %981 = vmatpush.bf16.msra.mxu0 %v828
        %982 = vmatmul.bf16.gmra.mxu0 %v798
        %v983 = vpop.f32.mrf.mxu0
        %v984 = vadd.f32 0.0, %v983
        %v985 = vpop.f32.mrf.mxu0
        %v986 = vadd.f32 0.0, %v985
        %987 = vmatmul.bf16.gmra.mxu0 %v801
        %v988 = vpop.f32.mrf.mxu0
        %v989 = vadd.f32 0.0, %v988
        %v990 = vpop.f32.mrf.mxu0
        %991 = vdwg.mxu0
        %v995 = vunpack.c.l.b16 %v719
        %v996 = vunpack.c.l.b16 %v720
        %v997 = vunpack.c.l.b16 %v721
        %v998 = vpack.c.b16 %v996, %v995
        %v999 = vpack.c.b16 %v997, %v997
        %v1001 = vsel %vm351, %v998, 0
        %v1004 = vsel %vm351, %v999, 0
        %v1007 = vsel %vm358, %v727, 0
        %v1010 = vsel %vm358, %v728, 0
        %v1013 = vsel %vm358, %v729, 0
        %v1016 = vsel %vm358, %v735, 0
        %v1019 = vsel %vm358, %v736, 0
        %v1022 = vsel %vm358, %v737, 0
        %v1025 = vsel %vm358, %v743, 0
        %v1028 = vsel %vm358, %v744, 0
        %v1031 = vsel %vm358, %v745, 0
        %1033 = vmatpush.bf16.msra.mxu0 0
        %1034 = vmatpush.bf16.msra.mxu0 0
        %1035 = vmatpush.bf16.msra.mxu0 0
        %1036 = vmatpush.bf16.msra.mxu0 0
        %1037 = vmatpush.bf16.msra.mxu0 0
        %1038 = vmatpush.bf16.msra.mxu0 0
        %1039 = vmatpush.bf16.msra.mxu0 0
        %1040 = vmatpush.bf16.msra.mxu0 %v1007
        %1041 = vmatmul.bf16.gmra.mxu0 %v1001
        %v1042 = vpop.f32.mrf.mxu0
        %v1043 = vadd.f32 %v840, %v1042
        %v1044 = vpop.f32.mrf.mxu0
        %v1045 = vadd.f32 %v842, %v1044
        %1046 = vmatmul.bf16.gmra.mxu0 %v1004
        %v1047 = vpop.f32.mrf.mxu0
        %v1048 = vadd.f32 %v845, %v1047
        %v1049 = vpop.f32.mrf.mxu0
        %1050 = vdwg.mxu0
        %1051 = vmatpush.bf16.msra.mxu0 0
        %1052 = vmatpush.bf16.msra.mxu0 0
        %1053 = vmatpush.bf16.msra.mxu0 0
        %1054 = vmatpush.bf16.msra.mxu0 0
        %1055 = vmatpush.bf16.msra.mxu0 0
        %1056 = vmatpush.bf16.msra.mxu0 0
        %1057 = vmatpush.bf16.msra.mxu0 0
        %1058 = vmatpush.bf16.msra.mxu0 %v1010
        %1059 = vmatmul.bf16.gmra.mxu0 %v1001
        %v1060 = vpop.f32.mrf.mxu0
        %v1061 = vadd.f32 %v858, %v1060
        %v1062 = vpop.f32.mrf.mxu0
        %v1063 = vadd.f32 %v860, %v1062
        %1064 = vmatmul.bf16.gmra.mxu0 %v1004
        %v1065 = vpop.f32.mrf.mxu0
        %v1066 = vadd.f32 %v863, %v1065
        %v1067 = vpop.f32.mrf.mxu0
        %1068 = vdwg.mxu0
        %1069 = vmatpush.bf16.msra.mxu0 0
        %1070 = vmatpush.bf16.msra.mxu0 0
        %1071 = vmatpush.bf16.msra.mxu0 0
        %1072 = vmatpush.bf16.msra.mxu0 0
        %1073 = vmatpush.bf16.msra.mxu0 0
        %1074 = vmatpush.bf16.msra.mxu0 0
        %1075 = vmatpush.bf16.msra.mxu0 0
        %1076 = vmatpush.bf16.msra.mxu0 %v1013
        %1077 = vmatmul.bf16.gmra.mxu0 %v1001
        %v1078 = vpop.f32.mrf.mxu0
        %v1079 = vadd.f32 %v876, %v1078
        %v1080 = vpop.f32.mrf.mxu0
        %v1081 = vadd.f32 %v878, %v1080
        %1082 = vmatmul.bf16.gmra.mxu0 %v1004
        %v1083 = vpop.f32.mrf.mxu0
        %v1084 = vadd.f32 %v881, %v1083
        %v1085 = vpop.f32.mrf.mxu0
        %1086 = vdwg.mxu0
        %1087 = vmatpush.bf16.msra.mxu0 0
        %1088 = vmatpush.bf16.msra.mxu0 0
        %1089 = vmatpush.bf16.msra.mxu0 0
        %1090 = vmatpush.bf16.msra.mxu0 0
        %1091 = vmatpush.bf16.msra.mxu0 0
        %1092 = vmatpush.bf16.msra.mxu0 0
        %1093 = vmatpush.bf16.msra.mxu0 0
        %1094 = vmatpush.bf16.msra.mxu0 %v1016
        %1095 = vmatmul.bf16.gmra.mxu0 %v1001
        %v1096 = vpop.f32.mrf.mxu0
        %v1097 = vadd.f32 %v894, %v1096
        %v1098 = vpop.f32.mrf.mxu0
        %v1099 = vadd.f32 %v896, %v1098
        %1100 = vmatmul.bf16.gmra.mxu0 %v1004
        %v1101 = vpop.f32.mrf.mxu0
        %v1102 = vadd.f32 %v899, %v1101
        %v1103 = vpop.f32.mrf.mxu0
        %1104 = vdwg.mxu0
        %1105 = vmatpush.bf16.msra.mxu0 0
        %1106 = vmatpush.bf16.msra.mxu0 0
        %1107 = vmatpush.bf16.msra.mxu0 0
        %1108 = vmatpush.bf16.msra.mxu0 0
        %1109 = vmatpush.bf16.msra.mxu0 0
        %1110 = vmatpush.bf16.msra.mxu0 0
        %1111 = vmatpush.bf16.msra.mxu0 0
        %1112 = vmatpush.bf16.msra.mxu0 %v1019
        %1113 = vmatmul.bf16.gmra.mxu0 %v1001
        %v1114 = vpop.f32.mrf.mxu0
        %v1115 = vadd.f32 %v912, %v1114
        %v1116 = vpop.f32.mrf.mxu0
        %v1117 = vadd.f32 %v914, %v1116
        %1118 = vmatmul.bf16.gmra.mxu0 %v1004
        %v1119 = vpop.f32.mrf.mxu0
        %v1120 = vadd.f32 %v917, %v1119
        %v1121 = vpop.f32.mrf.mxu0
        %1122 = vdwg.mxu0
        %1123 = vmatpush.bf16.msra.mxu0 0
        %1124 = vmatpush.bf16.msra.mxu0 0
        %1125 = vmatpush.bf16.msra.mxu0 0
        %1126 = vmatpush.bf16.msra.mxu0 0
        %1127 = vmatpush.bf16.msra.mxu0 0
        %1128 = vmatpush.bf16.msra.mxu0 0
        %1129 = vmatpush.bf16.msra.mxu0 0
        %1130 = vmatpush.bf16.msra.mxu0 %v1022
        %1131 = vmatmul.bf16.gmra.mxu0 %v1001
        %v1132 = vpop.f32.mrf.mxu0
        %v1133 = vadd.f32 %v930, %v1132
        %v1134 = vpop.f32.mrf.mxu0
        %v1135 = vadd.f32 %v932, %v1134
        %1136 = vmatmul.bf16.gmra.mxu0 %v1004
        %v1137 = vpop.f32.mrf.mxu0
        %v1138 = vadd.f32 %v935, %v1137
        %v1139 = vpop.f32.mrf.mxu0
        %1140 = vdwg.mxu0
        %1141 = vmatpush.bf16.msra.mxu0 0
        %1142 = vmatpush.bf16.msra.mxu0 0
        %1143 = vmatpush.bf16.msra.mxu0 0
        %1144 = vmatpush.bf16.msra.mxu0 0
        %1145 = vmatpush.bf16.msra.mxu0 0
        %1146 = vmatpush.bf16.msra.mxu0 0
        %1147 = vmatpush.bf16.msra.mxu0 0
        %1148 = vmatpush.bf16.msra.mxu0 %v1025
        %1149 = vmatmul.bf16.gmra.mxu0 %v1001
        %v1150 = vpop.f32.mrf.mxu0
        %v1151 = vadd.f32 %v948, %v1150
        %v1152 = vpop.f32.mrf.mxu0
        %v1153 = vadd.f32 %v950, %v1152
        %1154 = vmatmul.bf16.gmra.mxu0 %v1004
        %v1155 = vpop.f32.mrf.mxu0
        %v1156 = vadd.f32 %v953, %v1155
        %v1157 = vpop.f32.mrf.mxu0
        %1158 = vdwg.mxu0
        %1159 = vmatpush.bf16.msra.mxu0 0
        %1160 = vmatpush.bf16.msra.mxu0 0
        %1161 = vmatpush.bf16.msra.mxu0 0
        %1162 = vmatpush.bf16.msra.mxu0 0
        %1163 = vmatpush.bf16.msra.mxu0 0
        %1164 = vmatpush.bf16.msra.mxu0 0
        %1165 = vmatpush.bf16.msra.mxu0 0
        %1166 = vmatpush.bf16.msra.mxu0 %v1028
        %1167 = vmatmul.bf16.gmra.mxu0 %v1001
        %v1168 = vpop.f32.mrf.mxu0
        %v1169 = vadd.f32 %v966, %v1168
        %v1170 = vpop.f32.mrf.mxu0
        %v1171 = vadd.f32 %v968, %v1170
        %1172 = vmatmul.bf16.gmra.mxu0 %v1004
        %v1173 = vpop.f32.mrf.mxu0
        %v1174 = vadd.f32 %v971, %v1173
        %v1175 = vpop.f32.mrf.mxu0
        %1176 = vdwg.mxu0
        %1177 = vmatpush.bf16.msra.mxu0 0
        %1178 = vmatpush.bf16.msra.mxu0 0
        %1179 = vmatpush.bf16.msra.mxu0 0
        %1180 = vmatpush.bf16.msra.mxu0 0
        %1181 = vmatpush.bf16.msra.mxu0 0
        %1182 = vmatpush.bf16.msra.mxu0 0
        %1183 = vmatpush.bf16.msra.mxu0 0
        %1184 = vmatpush.bf16.msra.mxu0 %v1031
        %1185 = vmatmul.bf16.gmra.mxu0 %v1001
        %v1186 = vpop.f32.mrf.mxu0
        %v1187 = vadd.f32 %v984, %v1186
        %v1188 = vpop.f32.mrf.mxu0
        %v1189 = vadd.f32 %v986, %v1188
        %1190 = vmatmul.bf16.gmra.mxu0 %v1004
        %v1191 = vpop.f32.mrf.mxu0
        %v1192 = vadd.f32 %v989, %v1191
        %v1193 = vpop.f32.mrf.mxu0
        %1194 = vdwg.mxu0
        %s1195 = scalar_lea.vmem %s4, 24
        %v1196 = vld [vmem:[%s1195] sm:$0xf]
        %v1197 = vld [vmem:[%s1195 + $0x4] sm:$0xf]
        %v1198 = vld [vmem:[%s1195 + $0x8] sm:$0xf]
        %1199 = vrot.lane.b32.xlu0 %v727, 92
        %v1200 = vpop.permute.xlu0 %1199
        %1201 = vrot.lane.b32.xlu0 %v728, 92
        %v1202 = vpop.permute.xlu0 %1201
        %1203 = vrot.lane.b32.xlu0 %v729, 92
        %v1204 = vpop.permute.xlu0 %1203
        %1205 = vrot.lane.b32.xlu0 %v751, 92
        %v1206 = vpop.permute.xlu0 %1205
        %v1207 = vsel %vm527, %v1200, %v1202
        %v1208 = vsel %vm527, %v1202, %v1204
        %v1209 = vsel %vm527, %v1204, %v1206
        %1210 = vrot.lane.b32.xlu0 %v735, 92
        %v1211 = vpop.permute.xlu0 %1210
        %1212 = vrot.lane.b32.xlu0 %v736, 92
        %v1213 = vpop.permute.xlu0 %1212
        %1214 = vrot.lane.b32.xlu0 %v737, 92
        %v1215 = vpop.permute.xlu0 %1214
        %1216 = vrot.lane.b32.xlu0 %v764, 92
        %v1217 = vpop.permute.xlu0 %1216
        %v1218 = vsel %vm527, %v1211, %v1213
        %v1219 = vsel %vm527, %v1213, %v1215
        %v1220 = vsel %vm527, %v1215, %v1217
        %1221 = vrot.lane.b32.xlu0 %v743, 92
        %v1222 = vpop.permute.xlu0 %1221
        %1223 = vrot.lane.b32.xlu0 %v744, 92
        %v1224 = vpop.permute.xlu0 %1223
        %1225 = vrot.lane.b32.xlu0 %v745, 92
        %v1226 = vpop.permute.xlu0 %1225
        %1227 = vrot.lane.b32.xlu0 %v777, 92
        %v1228 = vpop.permute.xlu0 %1227
        %v1229 = vsel %vm527, %v1222, %v1224
        %v1230 = vsel %vm527, %v1224, %v1226
        %v1231 = vsel %vm527, %v1226, %v1228
        %v1235 = vunpack.c.l.b16 %v1196
        %v1236 = vunpack.c.l.b16 %v1197
        %v1237 = vunpack.c.l.b16 %v1198
        %v1238 = vpack.c.b16 %v1236, %v1235
        %v1239 = vpack.c.b16 %v1237, %v1237
        %v1241 = vsel %vm351, %v1238, 0
        %v1244 = vsel %vm351, %v1239, 0
        %v1247 = vsel %vm358, %v1207, 0
        %v1250 = vsel %vm358, %v1208, 0
        %v1253 = vsel %vm358, %v1209, 0
        %v1256 = vsel %vm358, %v1218, 0
        %v1259 = vsel %vm358, %v1219, 0
        %v1262 = vsel %vm358, %v1220, 0
        %v1265 = vsel %vm358, %v1229, 0
        %v1268 = vsel %vm358, %v1230, 0
        %v1271 = vsel %vm358, %v1231, 0
        %1273 = vmatpush.bf16.msra.mxu0 0
        %1274 = vmatpush.bf16.msra.mxu0 0
        %1275 = vmatpush.bf16.msra.mxu0 0
        %1276 = vmatpush.bf16.msra.mxu0 0
        %1277 = vmatpush.bf16.msra.mxu0 0
        %1278 = vmatpush.bf16.msra.mxu0 0
        %1279 = vmatpush.bf16.msra.mxu0 0
        %1280 = vmatpush.bf16.msra.mxu0 %v1247
        %1281 = vmatmul.bf16.gmra.mxu0 %v1241
        %v1282 = vpop.f32.mrf.mxu0
        %v1283 = vadd.f32 0.0, %v1282
        %v1284 = vpop.f32.mrf.mxu0
        %v1285 = vadd.f32 0.0, %v1284
        %1286 = vmatmul.bf16.gmra.mxu0 %v1244
        %v1287 = vpop.f32.mrf.mxu0
        %v1288 = vadd.f32 0.0, %v1287
        %v1289 = vpop.f32.mrf.mxu0
        %1290 = vdwg.mxu0
        %1291 = vmatpush.bf16.msra.mxu0 0
        %1292 = vmatpush.bf16.msra.mxu0 0
        %1293 = vmatpush.bf16.msra.mxu0 0
        %1294 = vmatpush.bf16.msra.mxu0 0
        %1295 = vmatpush.bf16.msra.mxu0 0
        %1296 = vmatpush.bf16.msra.mxu0 0
        %1297 = vmatpush.bf16.msra.mxu0 0
        %1298 = vmatpush.bf16.msra.mxu0 %v1250
        %1299 = vmatmul.bf16.gmra.mxu0 %v1241
        %v1300 = vpop.f32.mrf.mxu0
        %v1301 = vadd.f32 0.0, %v1300
        %v1302 = vpop.f32.mrf.mxu0
        %v1303 = vadd.f32 0.0, %v1302
        %1304 = vmatmul.bf16.gmra.mxu0 %v1244
        %v1305 = vpop.f32.mrf.mxu0
        %v1306 = vadd.f32 0.0, %v1305
        %v1307 = vpop.f32.mrf.mxu0
        %1308 = vdwg.mxu0
        %1309 = vmatpush.bf16.msra.mxu0 0
        %1310 = vmatpush.bf16.msra.mxu0 0
        %1311 = vmatpush.bf16.msra.mxu0 0
        %1312 = vmatpush.bf16.msra.mxu0 0
        %1313 = vmatpush.bf16.msra.mxu0 0
        %1314 = vmatpush.bf16.msra.mxu0 0
        %1315 = vmatpush.bf16.msra.mxu0 0
        %1316 = vmatpush.bf16.msra.mxu0 %v1253
        %1317 = vmatmul.bf16.gmra.mxu0 %v1241
        %v1318 = vpop.f32.mrf.mxu0
        %v1319 = vadd.f32 0.0, %v1318
        %v1320 = vpop.f32.mrf.mxu0
        %v1321 = vadd.f32 0.0, %v1320
        %1322 = vmatmul.bf16.gmra.mxu0 %v1244
        %v1323 = vpop.f32.mrf.mxu0
        %v1324 = vadd.f32 0.0, %v1323
        %v1325 = vpop.f32.mrf.mxu0
        %1326 = vdwg.mxu0
        %1327 = vmatpush.bf16.msra.mxu0 0
        %1328 = vmatpush.bf16.msra.mxu0 0
        %1329 = vmatpush.bf16.msra.mxu0 0
        %1330 = vmatpush.bf16.msra.mxu0 0
        %1331 = vmatpush.bf16.msra.mxu0 0
        %1332 = vmatpush.bf16.msra.mxu0 0
        %1333 = vmatpush.bf16.msra.mxu0 0
        %1334 = vmatpush.bf16.msra.mxu0 %v1256
        %1335 = vmatmul.bf16.gmra.mxu0 %v1241
        %v1336 = vpop.f32.mrf.mxu0
        %v1337 = vadd.f32 0.0, %v1336
        %v1338 = vpop.f32.mrf.mxu0
        %v1339 = vadd.f32 0.0, %v1338
        %1340 = vmatmul.bf16.gmra.mxu0 %v1244
        %v1341 = vpop.f32.mrf.mxu0
        %v1342 = vadd.f32 0.0, %v1341
        %v1343 = vpop.f32.mrf.mxu0
        %1344 = vdwg.mxu0
        %1345 = vmatpush.bf16.msra.mxu0 0
        %1346 = vmatpush.bf16.msra.mxu0 0
        %1347 = vmatpush.bf16.msra.mxu0 0
        %1348 = vmatpush.bf16.msra.mxu0 0
        %1349 = vmatpush.bf16.msra.mxu0 0
        %1350 = vmatpush.bf16.msra.mxu0 0
        %1351 = vmatpush.bf16.msra.mxu0 0
        %1352 = vmatpush.bf16.msra.mxu0 %v1259
        %1353 = vmatmul.bf16.gmra.mxu0 %v1241
        %v1354 = vpop.f32.mrf.mxu0
        %v1355 = vadd.f32 0.0, %v1354
        %v1356 = vpop.f32.mrf.mxu0
        %v1357 = vadd.f32 0.0, %v1356
        %1358 = vmatmul.bf16.gmra.mxu0 %v1244
        %v1359 = vpop.f32.mrf.mxu0
        %v1360 = vadd.f32 0.0, %v1359
        %v1361 = vpop.f32.mrf.mxu0
        %1362 = vdwg.mxu0
        %1363 = vmatpush.bf16.msra.mxu0 0
        %1364 = vmatpush.bf16.msra.mxu0 0
        %1365 = vmatpush.bf16.msra.mxu0 0
        %1366 = vmatpush.bf16.msra.mxu0 0
        %1367 = vmatpush.bf16.msra.mxu0 0
        %1368 = vmatpush.bf16.msra.mxu0 0
        %1369 = vmatpush.bf16.msra.mxu0 0
        %1370 = vmatpush.bf16.msra.mxu0 %v1262
        %1371 = vmatmul.bf16.gmra.mxu0 %v1241
        %v1372 = vpop.f32.mrf.mxu0
        %v1373 = vadd.f32 0.0, %v1372
        %v1374 = vpop.f32.mrf.mxu0
        %v1375 = vadd.f32 0.0, %v1374
        %1376 = vmatmul.bf16.gmra.mxu0 %v1244
        %v1377 = vpop.f32.mrf.mxu0
        %v1378 = vadd.f32 0.0, %v1377
        %v1379 = vpop.f32.mrf.mxu0
        %1380 = vdwg.mxu0
        %1381 = vmatpush.bf16.msra.mxu0 0
        %1382 = vmatpush.bf16.msra.mxu0 0
        %1383 = vmatpush.bf16.msra.mxu0 0
        %1384 = vmatpush.bf16.msra.mxu0 0
        %1385 = vmatpush.bf16.msra.mxu0 0
        %1386 = vmatpush.bf16.msra.mxu0 0
        %1387 = vmatpush.bf16.msra.mxu0 0
        %1388 = vmatpush.bf16.msra.mxu0 %v1265
        %1389 = vmatmul.bf16.gmra.mxu0 %v1241
        %v1390 = vpop.f32.mrf.mxu0
        %v1391 = vadd.f32 0.0, %v1390
        %v1392 = vpop.f32.mrf.mxu0
        %v1393 = vadd.f32 0.0, %v1392
        %1394 = vmatmul.bf16.gmra.mxu0 %v1244
        %v1395 = vpop.f32.mrf.mxu0
        %v1396 = vadd.f32 0.0, %v1395
        %v1397 = vpop.f32.mrf.mxu0
        %1398 = vdwg.mxu0
        %1399 = vmatpush.bf16.msra.mxu0 0
        %1400 = vmatpush.bf16.msra.mxu0 0
        %1401 = vmatpush.bf16.msra.mxu0 0
        %1402 = vmatpush.bf16.msra.mxu0 0
        %1403 = vmatpush.bf16.msra.mxu0 0
        %1404 = vmatpush.bf16.msra.mxu0 0
        %1405 = vmatpush.bf16.msra.mxu0 0
        %1406 = vmatpush.bf16.msra.mxu0 %v1268
        %1407 = vmatmul.bf16.gmra.mxu0 %v1241
        %v1408 = vpop.f32.mrf.mxu0
        %v1409 = vadd.f32 0.0, %v1408
        %v1410 = vpop.f32.mrf.mxu0
        %v1411 = vadd.f32 0.0, %v1410
        %1412 = vmatmul.bf16.gmra.mxu0 %v1244
        %v1413 = vpop.f32.mrf.mxu0
        %v1414 = vadd.f32 0.0, %v1413
        %v1415 = vpop.f32.mrf.mxu0
        %1416 = vdwg.mxu0
        %1417 = vmatpush.bf16.msra.mxu0 0
        %1418 = vmatpush.bf16.msra.mxu0 0
        %1419 = vmatpush.bf16.msra.mxu0 0
        %1420 = vmatpush.bf16.msra.mxu0 0
        %1421 = vmatpush.bf16.msra.mxu0 0
        %1422 = vmatpush.bf16.msra.mxu0 0
        %1423 = vmatpush.bf16.msra.mxu0 0
        %1424 = vmatpush.bf16.msra.mxu0 %v1271
        %1425 = vmatmul.bf16.gmra.mxu0 %v1241
        %v1426 = vpop.f32.mrf.mxu0
        %v1427 = vadd.f32 0.0, %v1426
        %v1428 = vpop.f32.mrf.mxu0
        %v1429 = vadd.f32 0.0, %v1428
        %1430 = vmatmul.bf16.gmra.mxu0 %v1244
        %v1431 = vpop.f32.mrf.mxu0
        %v1432 = vadd.f32 0.0, %v1431
        %v1433 = vpop.f32.mrf.mxu0
        %1434 = vdwg.mxu0
        %v1435 = vadd.f32 %v1043, %v1283
        %v1436 = vadd.f32 %v1061, %v1301
        %v1437 = vadd.f32 %v1079, %v1319
        %v1438 = vadd.f32 %v1097, %v1337
        %v1439 = vadd.f32 %v1115, %v1355
        %v1440 = vadd.f32 %v1133, %v1373
        %v1441 = vadd.f32 %v1151, %v1391
        %v1442 = vadd.f32 %v1169, %v1409
        %v1443 = vadd.f32 %v1187, %v1427
        %v1444 = vadd.f32 %v1045, %v1285
        %v1445 = vadd.f32 %v1063, %v1303
        %v1446 = vadd.f32 %v1081, %v1321
        %v1447 = vadd.f32 %v1099, %v1339
        %v1448 = vadd.f32 %v1117, %v1357
        %v1449 = vadd.f32 %v1135, %v1375
        %v1450 = vadd.f32 %v1153, %v1393
        %v1451 = vadd.f32 %v1171, %v1411
        %v1452 = vadd.f32 %v1189, %v1429
        %v1453 = vadd.f32 %v1048, %v1288
        %v1454 = vadd.f32 %v1066, %v1306
        %v1455 = vadd.f32 %v1084, %v1324
        %v1456 = vadd.f32 %v1102, %v1342
        %v1457 = vadd.f32 %v1120, %v1360
        %v1458 = vadd.f32 %v1138, %v1378
        %v1459 = vadd.f32 %v1156, %v1396
        %v1460 = vadd.f32 %v1174, %v1414
        %v1461 = vadd.f32 %v1192, %v1432
        %1465 = vrot.lane.b32.xlu0 %v1444, 127
        %v1466 = vpop.permute.xlu0 %1465
        %1467 = vrot.lane.b32.xlu0 %v1445, 127
        %v1468 = vpop.permute.xlu0 %1467
        %1469 = vrot.lane.b32.xlu0 %v1446, 127
        %v1470 = vpop.permute.xlu0 %1469
        %v1471 = vsel %vm618, %v1466, %v1468
        %v1472 = vsel %vm618, %v1468, %v1470
        %v1477 = vsel %vm618, %v1470, %v1466
        %v1478 = vadd.f32 %v1435, %v1471
        %v1479 = vadd.f32 %v1436, %v1472
        %v1480 = vadd.f32 %v1437, %v1477
        %1484 = vrot.lane.b32.xlu0 %v1453, 126
        %v1485 = vpop.permute.xlu0 %1484
        %1486 = vrot.lane.b32.xlu0 %v1454, 126
        %v1487 = vpop.permute.xlu0 %1486
        %1488 = vrot.lane.b32.xlu0 %v1455, 126
        %v1489 = vpop.permute.xlu0 %1488
        %v1490 = vsel %vm638, %v1485, %v1487
        %v1491 = vsel %vm638, %v1487, %v1489
        %v1496 = vsel %vm638, %v1489, %v1485
        %v1497 = vadd.f32 %v1478, %v1490
        %v1498 = vadd.f32 %v1479, %v1491
        %v1499 = vadd.f32 %v1480, %v1496
        %v1500 = vadd.f32 %v655, %v1497
        %v1501 = vadd.f32 %v656, %v1498
        %v1502 = vadd.f32 %v657, %v1499
        %v1503 = vmax.f32 %v1500, 0.0
        %v1504 = vmax.f32 %v1501, 0.0
        %v1505 = vmax.f32 %v1502, 0.0
        %1509 = vrot.lane.b32.xlu0 %v1447, 127
        %v1510 = vpop.permute.xlu0 %1509
        %1511 = vrot.lane.b32.xlu0 %v1448, 127
        %v1512 = vpop.permute.xlu0 %1511
        %1513 = vrot.lane.b32.xlu0 %v1449, 127
        %v1514 = vpop.permute.xlu0 %1513
        %v1515 = vsel %vm618, %v1510, %v1512
        %v1516 = vsel %vm618, %v1512, %v1514
        %v1521 = vsel %vm618, %v1514, %v1510
        %v1522 = vadd.f32 %v1438, %v1515
        %v1523 = vadd.f32 %v1439, %v1516
        %v1524 = vadd.f32 %v1440, %v1521
        %1528 = vrot.lane.b32.xlu0 %v1456, 126
        %v1529 = vpop.permute.xlu0 %1528
        %1530 = vrot.lane.b32.xlu0 %v1457, 126
        %v1531 = vpop.permute.xlu0 %1530
        %1532 = vrot.lane.b32.xlu0 %v1458, 126
        %v1533 = vpop.permute.xlu0 %1532
        %v1534 = vsel %vm638, %v1529, %v1531
        %v1535 = vsel %vm638, %v1531, %v1533
        %v1540 = vsel %vm638, %v1533, %v1529
        %v1541 = vadd.f32 %v1522, %v1534
        %v1542 = vadd.f32 %v1523, %v1535
        %v1543 = vadd.f32 %v1524, %v1540
        %v1544 = vadd.f32 %v655, %v1541
        %v1545 = vadd.f32 %v656, %v1542
        %v1546 = vadd.f32 %v657, %v1543
        %v1547 = vmax.f32 %v1544, 0.0
        %v1548 = vmax.f32 %v1545, 0.0
        %v1549 = vmax.f32 %v1546, 0.0
        %v1550 = vadd.f32 %v1503, %v1547
        %v1551 = vadd.f32 %v1504, %v1548
        %v1552 = vadd.f32 %v1505, %v1549
        %1556 = vrot.lane.b32.xlu0 %v1450, 127
        %v1557 = vpop.permute.xlu0 %1556
        %1558 = vrot.lane.b32.xlu0 %v1451, 127
        %v1559 = vpop.permute.xlu0 %1558
        %1560 = vrot.lane.b32.xlu0 %v1452, 127
        %v1561 = vpop.permute.xlu0 %1560
        %v1562 = vsel %vm618, %v1557, %v1559
        %v1563 = vsel %vm618, %v1559, %v1561
        %v1568 = vsel %vm618, %v1561, %v1557
        %v1569 = vadd.f32 %v1441, %v1562
        %v1570 = vadd.f32 %v1442, %v1563
        %v1571 = vadd.f32 %v1443, %v1568
        %1575 = vrot.lane.b32.xlu0 %v1459, 126
        %v1576 = vpop.permute.xlu0 %1575
        %1577 = vrot.lane.b32.xlu0 %v1460, 126
        %v1578 = vpop.permute.xlu0 %1577
        %1579 = vrot.lane.b32.xlu0 %v1461, 126
        %v1580 = vpop.permute.xlu0 %1579
        %v1581 = vsel %vm638, %v1576, %v1578
        %v1582 = vsel %vm638, %v1578, %v1580
        %v1587 = vsel %vm638, %v1580, %v1576
        %v1588 = vadd.f32 %v1569, %v1581
        %v1589 = vadd.f32 %v1570, %v1582
        %v1590 = vadd.f32 %v1571, %v1587
        %v1591 = vadd.f32 %v655, %v1588
        %v1592 = vadd.f32 %v656, %v1589
        %v1593 = vadd.f32 %v657, %v1590
        %v1594 = vmax.f32 %v1591, 0.0
        %v1595 = vmax.f32 %v1592, 0.0
        %v1596 = vmax.f32 %v1593, 0.0
        %v1597 = vadd.f32 %v1550, %v1594
        %v1598 = vadd.f32 %v1551, %v1595
        %v1599 = vadd.f32 %v1552, %v1596
        %1600 = vst [vmem:[%s299] sm:$0xff] %v1597
        %1601 = vst [vmem:[%s299 + $0x8] sm:$0xff] %v1598
        %1602 = vst [vmem:[%s299 + $0x10] sm:$0xff] %v1599
        %s1603 = sand.u32 %s172, 1
        %s1604 = scalar_lea.sflag [#allocation4], %s1603
        %s1605 = sand.u32 %s172, 1
        %s1606 = smul.addr %s1605, 24
        %s1607 = scalar_lea.vmem [#allocation5], %s1606
        // Predicated region
        $region49: #{tpu_custom_call.1} parent=43 // pred_check
          %p1608 = pneg %p182
        $region50: #{tpu_custom_call.1} parent=43 // pred_check_branch
          %1610 = sbr.rel (%p1608) target = $region52
        $region51: #{tpu_custom_call.1} parent=43 // pred_region
          %1612 = vsyncadd %s1604, 0
          %s1613 = smul.addr %s23, 3
          %s1614 = smul.addr %s1613, 8
          %s1615 = scalar_lea.hbm %s6, %s1614
          %s1617 = sshll.u32 %s1607, 4
          %s1618 = int_to_ptr.vmem [resolvable:$true] %s1617
          %s1619 = sshll.u32 %s1615, 4
          %s1620 = int_to_ptr.hbm [resolvable:$true] %s1619
          %1622 = dma.vmem_to_hbm [thread:$0]  %s1618, 384, %s1620, %s1604
        $region52: #{tpu_custom_call.1} parent=43 // pred_fallthru
          _
      $region44: #{tpu_custom_call.1} parent=5 // pred_fallthru
        _
      %p1623 = scmp.le.s32.totalorder 2, %s18
      // Predicated region
      $region53: #{tpu_custom_call.1} parent=5 // pred_check
        %p1624 = pneg %p1623
      $region54: #{tpu_custom_call.1} parent=5 // pred_check_branch
        %1626 = sbr.rel (%p1624) target = $region56
      $region55: #{tpu_custom_call.1} parent=5 // pred_region
        %s1627 = ssub.s32 %s18, 2
        // Predicated region
        $region57: #{tpu_custom_call.1} parent=55 // pred_check
          %p1628 = pneg %p188
        $region58: #{tpu_custom_call.1} parent=55 // pred_check_branch
          %1630 = sbr.rel (%p1628) target = $region60
        $region59: #{tpu_custom_call.1} parent=55 // pred_region
          %s1631 = sand.u32 %s173, 1
          %s1632 = scalar_lea.sflag [#allocation4], %s1631
          %s1633 = sand.u32 %s173, 1
          %s1634 = smul.addr %s1633, 24
          %s1635 = scalar_lea.vmem [#allocation5], %s1634
          %1637 = dma.done %s1632, 384
        $region60: #{tpu_custom_call.1} parent=55 // pred_fallthru
          _
      $region56: #{tpu_custom_call.1} parent=5 // pred_fallthru
        _
    $region6: #{tpu_custom_call.1} parent=1 // loop_footer
      %s22 = sadd.s32 1, %s18
    $region7: #{tpu_custom_call.1} parent=1 // loop_footer_branch
      %17 = sbr.rel target = $region3
    $region8: #{tpu_custom_call.1} parent=1 // loop_exit
      _
    %1638 = vsyncpa [#allocation3], 1
    %s1639 = scalar_lea.sflag [#allocation3], 1
    %1640 = vsyncpa %s1639, 1
    %1641 = vsyncpa [#allocation4], 1
    %s1642 = scalar_lea.sflag [#allocation4], 1
    %1643 = vsyncpa %s1642, 1

</llo_original>
